<compile_context>
chip_gen: v7x
topology: tpu7x:2x2x1
jax: 0.10.0
libtpu: 0.0.40
codegen_flags: <defaults>
</compile_context>

<pallas_src>
import jax
import jax.numpy as jnp
from jax.experimental import pallas as pl
from jax.experimental.pallas import tpu as pltpu


_VMEM = pl.BlockSpec(memory_space=pltpu.MemorySpace.VMEM)


def _make_generator_rnn_kernel(n_layers, seq_len, batch, hidden):
    """Builds the fused (LSTM stack + Linear head) kernel for static shapes."""
    T, B, H = seq_len, batch, hidden

    def kernel(*refs):
        # refs: x, (wih, whh, b) * n_layers, wout, bout, h0, c0
        #       | out, hn, cn | hslab scratch
        x_ref = refs[0]
        layer_refs = refs[1:1 + 3 * n_layers]
        (wout_ref, bout_ref, h0_ref, c0_ref,
         out_ref, hn_ref, cn_ref, hslab_ref) = refs[1 + 3 * n_layers:]

        for l in range(n_layers):
            wih_ref = layer_refs[3 * l]        # (F, 4H)   bf16
            whh_ref = layer_refs[3 * l + 1]    # (4, H, H) bf16 (per-gate)
            b_ref = layer_refs[3 * l + 2]      # (1, 4H)   f32 (b_ih + b_hh)

            # Layer input: time-major flattened (T*B, F) slab.
            src = x_ref if l == 0 else hslab_ref
            cur = src[...]

            # Hoisted input projection: one big MXU matmul for all T steps.
            xg = (jnp.dot(cur.astype(jnp.bfloat16), wih_ref[...],
                          preferred_element_type=jnp.float32)
                  + b_ref[...])                               # (T*B, 4H) f32

            # Split the gate axis ONCE, off the serial recurrence, so the
            # per-step accesses are static row slices (no lane shifts in loop).
            xg_gates = [xg[:, g * H:(g + 1) * H] for g in range(4)]
            whh_gates = [whh_ref[g] for g in range(4)]        # 4 x (H, H) bf16

            h = h0_ref[l]                                     # (B, H) f32
            c = c0_ref[l]                                     # (B, H) f32

            # Fully unrolled recurrence: only h @ W_hh sits on the serial path.
            for t in range(T):
                hb = h.astype(jnp.bfloat16)
                pre = [xg_gates[g][t * B:(t + 1) * B, :]
                       + jnp.dot(hb, whh_gates[g],
                                 preferred_element_type=jnp.float32)
                       for g in range(4)]                     # each (B, H) f32
                i_gate = jax.nn.sigmoid(pre[0])
                f_gate = jax.nn.sigmoid(pre[1])
                g_gate = jnp.tanh(pre[2])
                o_gate = jax.nn.sigmoid(pre[3])
                c = f_gate * c + i_gate * g_gate              # cell stays f32
                h = o_gate * jnp.tanh(c)
                hslab_ref[t * B:(t + 1) * B, :] = h           # VMEM scratch

            hn_ref[l] = h
            cn_ref[l] = c

        # Fused output head on the VMEM-resident hidden slab (no HBM round
        # trip, no second pallas_call, no XLA transpose between kernels).
        slab = hslab_ref[...].astype(jnp.bfloat16)            # (T*B, H)
        out_ref[...] = (jnp.dot(slab, wout_ref[...],
                                preferred_element_type=jnp.float32)
                        + bout_ref[...])                      # (T*B, O) f32

    return kernel


class GeneratorRNNPallas:
    """Forward-only JAX/Pallas port of GeneratorRNN (ylstm + Linear head)."""

    def __init__(self, input_size, hidden_size, output_size, n_layers=1,
                 forget_bias=0.0, key=None):
        self.input_size = input_size
        self.hidden_size = hidden_size
        self.output_size = output_size
        self.n_layers = n_layers

        key = jax.random.PRNGKey(0) if key is None else key

        def orthogonal(k, shape):
            a = jax.random.normal(k, shape, jnp.float32)
            q, r = jnp.linalg.qr(a.T if shape[0] < shape[1] else a)
            q = q * jnp.sign(jnp.diagonal(r))[None, :]
            return (q.T if shape[0] < shape[1] else q)[:shape[0], :shape[1]]

        self.layers = []
        for l in range(n_layers):
            in_sz = input_size if l == 0 else hidden_size
            key, k1, k2, k3 = jax.random.split(key, 4)
            w_ih = orthogonal(k1, (4 * hidden_size, in_sz))        # (4H, F)
            w_hh = orthogonal(k2, (4 * hidden_size, hidden_size))  # (4H, H)
            # LSTM.initialize(): forget-gate bias slice set to forget_bias;
            # b_ih + b_hh folded into one vector (equivalent for forward).
            b = 0.1 * jax.random.normal(k3, (4 * hidden_size,), jnp.float32)
            b = b.at[hidden_size:2 * hidden_size].set(forget_bias)

            wih_t = jnp.asarray(w_ih.T, jnp.bfloat16)              # (F, 4H)
            whh_t = jnp.asarray(w_hh.T, jnp.float32)               # (H, 4H)
            # Per-gate recurrent weights -> (4, H, H) so each gate's
            # pre-activation is its own lane-aligned slab inside the kernel.
            whh_gates = jnp.stack(
                [whh_t[:, g * hidden_size:(g + 1) * hidden_size]
                 for g in range(4)], axis=0).astype(jnp.bfloat16)  # (4, H, H)
            self.layers.append((wih_t, whh_gates,
                                b.reshape(1, 4 * hidden_size)))

        key, kw, kb = jax.random.split(key, 3)
        w_out = orthogonal(kw, (output_size, hidden_size))         # (O, H)
        self.w_out_t = jnp.asarray(w_out.T, jnp.bfloat16)          # (H, O)
        self.b_out = 0.1 * jax.random.normal(kb, (1, output_size), jnp.float32)

    def __call__(self, inputs, init_hidden):
        """inputs: (B, T, input_size) batch_first; init_hidden: (h0, c0), each (L, B, H)."""
        h0, c0 = init_hidden
        B, T, F = inputs.shape
        H, O, L = self.hidden_size, self.output_size, self.n_layers

        # Time-major flattened input so step t is a contiguous row block.
        x_tm = jnp.transpose(inputs, (1, 0, 2)).reshape(T * B, F)

        args = [x_tm]
        for wih_t, whh_gates, b in self.layers:
            args.extend((wih_t, whh_gates, b))
        args.extend((self.w_out_t, self.b_out,
                     h0.astype(jnp.float32), c0.astype(jnp.float32)))

        kernel = _make_generator_rnn_kernel(L, T, B, H)
        out_flat, h_n, c_n = pl.pallas_call(
            kernel,
            out_shape=(
                jax.ShapeDtypeStruct((T * B, O), jnp.float32),
                jax.ShapeDtypeStruct((L, B, H), jnp.float32),
                jax.ShapeDtypeStruct((L, B, H), jnp.float32),
            ),
            in_specs=[_VMEM] * len(args),
            out_specs=(_VMEM, _VMEM, _VMEM),
            scratch_shapes=[pltpu.VMEM((T * B, H), jnp.float32)],
        )(*args)

        outputs = jnp.transpose(out_flat.reshape(T, B, O), (1, 0, 2))  # (B,T,O)
        return outputs, (h_n, c_n)


if __name__ == "__main__":
    B, T = 2, 8
    input_size, hidden_size, output_size, n_layers = 32, 32, 16, 1

    model = GeneratorRNNPallas(input_size, hidden_size, output_size, n_layers)

    key = jax.random.PRNGKey(0)
    k_x, k_h, k_c = jax.random.split(key, 3)
    x = jax.random.normal(k_x, (B, T, input_size), jnp.float32)
    h0 = jax.random.normal(k_h, (n_layers, B, hidden_size), jnp.float32)
    c0 = jax.random.normal(k_c, (n_layers, B, hidden_size), jnp.float32)

    outputs, (h_n, c_n) = model(x, (h0, c0))
    jax.block_until_ready((outputs, h_n, c_n))

    assert outputs.shape == (B, T, output_size)
    assert h_n.shape == (n_layers, B, hidden_size)
    assert c_n.shape == (n_layers, B, hidden_size)
    assert bool(jnp.all(jnp.isfinite(outputs)))
    print("KERNEL_OK")
</pallas_src>

<mosaic_0001>
module attributes {stable_mosaic.version = 11 : i64} {
  func.func @kernel(%arg0: memref<16x32xf32, #tpu.memory_space<vmem>>, %arg1: memref<32x128xbf16, #tpu.memory_space<vmem>>, %arg2: memref<4x32x32xbf16, #tpu.memory_space<vmem>>, %arg3: memref<1x128xf32, #tpu.memory_space<vmem>>, %arg4: memref<32x16xbf16, #tpu.memory_space<vmem>>, %arg5: memref<1x16xf32, #tpu.memory_space<vmem>>, %arg6: memref<1x2x32xf32, #tpu.memory_space<vmem>>, %arg7: memref<1x2x32xf32, #tpu.memory_space<vmem>>, %arg8: memref<16x16xf32, #tpu.memory_space<vmem>>, %arg9: memref<1x2x32xf32, #tpu.memory_space<vmem>>, %arg10: memref<1x2x32xf32, #tpu.memory_space<vmem>>, %arg11: memref<16x32xf32, #tpu.memory_space<vmem>>) attributes {dimension_semantics = [], scalar_prefetch = 0 : i64, scratch_operands = 1 : i64, tpu.core_type = #tpu.core_type<tc>} {
    %c0 = arith.constant 0 : index
    %c0_0 = arith.constant 0 : index
    %0 = vector.load %arg0[%c0, %c0_0] : memref<16x32xf32, #tpu.memory_space<vmem>>, vector<16x32xf32>
    %1 = arith.truncf %0 : vector<16x32xf32> to vector<16x32xbf16>
    %c0_1 = arith.constant 0 : index
    %c0_2 = arith.constant 0 : index
    %2 = vector.load %arg1[%c0_1, %c0_2] : memref<32x128xbf16, #tpu.memory_space<vmem>>, vector<32x128xbf16>
    %cst = arith.constant dense<0.000000e+00> : vector<16x128xf32>
    %3 = tpu.matmul %1, %2, %cst {dimension_numbers = #tpu.dot_dimension_numbers<[1], [0], [0], [1], [0, 0, 1, 1], [], []>} : vector<16x32xbf16>, vector<32x128xbf16>, vector<16x128xf32> -> vector<16x128xf32>
    %c0_3 = arith.constant 0 : index
    %c0_4 = arith.constant 0 : index
    %4 = vector.load %arg3[%c0_3, %c0_4] : memref<1x128xf32, #tpu.memory_space<vmem>>, vector<1x128xf32>
    %5 = vector.broadcast %4 : vector<1x128xf32> to vector<16x128xf32>
    %6 = arith.addf %3, %5 : vector<16x128xf32>
    %7 = vector.extract_strided_slice %6 {offsets = [0, 0], sizes = [16, 32], strides = [1, 1]} : vector<16x128xf32> to vector<16x32xf32>
    %8 = vector.extract_strided_slice %6 {offsets = [0, 32], sizes = [16, 32], strides = [1, 1]} : vector<16x128xf32> to vector<16x32xf32>
    %9 = vector.extract_strided_slice %6 {offsets = [0, 64], sizes = [16, 32], strides = [1, 1]} : vector<16x128xf32> to vector<16x32xf32>
    %10 = vector.extract_strided_slice %6 {offsets = [0, 96], sizes = [16, 32], strides = [1, 1]} : vector<16x128xf32> to vector<16x32xf32>
    %c0_5 = arith.constant 0 : index
    %c0_6 = arith.constant 0 : index
    %c0_7 = arith.constant 0 : index
    %11 = vector.load %arg2[%c0_5, %c0_6, %c0_7] : memref<4x32x32xbf16, #tpu.memory_space<vmem>>, vector<1x32x32xbf16>
    %12 = vector.shape_cast %11 : vector<1x32x32xbf16> to vector<32x32xbf16>
    %c1 = arith.constant 1 : index
    %c0_8 = arith.constant 0 : index
    %c0_9 = arith.constant 0 : index
    %13 = vector.load %arg2[%c1, %c0_8, %c0_9] : memref<4x32x32xbf16, #tpu.memory_space<vmem>>, vector<1x32x32xbf16>
    %14 = vector.shape_cast %13 : vector<1x32x32xbf16> to vector<32x32xbf16>
    %c2 = arith.constant 2 : index
    %c0_10 = arith.constant 0 : index
    %c0_11 = arith.constant 0 : index
    %15 = vector.load %arg2[%c2, %c0_10, %c0_11] : memref<4x32x32xbf16, #tpu.memory_space<vmem>>, vector<1x32x32xbf16>
    %16 = vector.shape_cast %15 : vector<1x32x32xbf16> to vector<32x32xbf16>
    %c3 = arith.constant 3 : index
    %c0_12 = arith.constant 0 : index
    %c0_13 = arith.constant 0 : index
    %17 = vector.load %arg2[%c3, %c0_12, %c0_13] : memref<4x32x32xbf16, #tpu.memory_space<vmem>>, vector<1x32x32xbf16>
    %18 = vector.shape_cast %17 : vector<1x32x32xbf16> to vector<32x32xbf16>
    %c0_14 = arith.constant 0 : index
    %c0_15 = arith.constant 0 : index
    %c0_16 = arith.constant 0 : index
    %19 = vector.load %arg6[%c0_14, %c0_15, %c0_16] : memref<1x2x32xf32, #tpu.memory_space<vmem>>, vector<1x2x32xf32>
    %20 = vector.shape_cast %19 : vector<1x2x32xf32> to vector<2x32xf32>
    %c0_17 = arith.constant 0 : index
    %c0_18 = arith.constant 0 : index
    %c0_19 = arith.constant 0 : index
    %21 = vector.load %arg7[%c0_17, %c0_18, %c0_19] : memref<1x2x32xf32, #tpu.memory_space<vmem>>, vector<1x2x32xf32>
    %22 = vector.shape_cast %21 : vector<1x2x32xf32> to vector<2x32xf32>
    %23 = arith.truncf %20 : vector<2x32xf32> to vector<2x32xbf16>
    %24 = vector.extract_strided_slice %7 {offsets = [0, 0], sizes = [2, 32], strides = [1, 1]} : vector<16x32xf32> to vector<2x32xf32>
    %cst_20 = arith.constant dense<0.000000e+00> : vector<2x32xf32>
    %25 = tpu.matmul %23, %12, %cst_20 {dimension_numbers = #tpu.dot_dimension_numbers<[1], [0], [0], [1], [0, 0, 1, 1], [], []>} : vector<2x32xbf16>, vector<32x32xbf16>, vector<2x32xf32> -> vector<2x32xf32>
    %26 = arith.addf %24, %25 : vector<2x32xf32>
    %27 = vector.extract_strided_slice %8 {offsets = [0, 0], sizes = [2, 32], strides = [1, 1]} : vector<16x32xf32> to vector<2x32xf32>
    %cst_21 = arith.constant dense<0.000000e+00> : vector<2x32xf32>
    %28 = tpu.matmul %23, %14, %cst_21 {dimension_numbers = #tpu.dot_dimension_numbers<[1], [0], [0], [1], [0, 0, 1, 1], [], []>} : vector<2x32xbf16>, vector<32x32xbf16>, vector<2x32xf32> -> vector<2x32xf32>
    %29 = arith.addf %27, %28 : vector<2x32xf32>
    %30 = vector.extract_strided_slice %9 {offsets = [0, 0], sizes = [2, 32], strides = [1, 1]} : vector<16x32xf32> to vector<2x32xf32>
    %cst_22 = arith.constant dense<0.000000e+00> : vector<2x32xf32>
    %31 = tpu.matmul %23, %16, %cst_22 {dimension_numbers = #tpu.dot_dimension_numbers<[1], [0], [0], [1], [0, 0, 1, 1], [], []>} : vector<2x32xbf16>, vector<32x32xbf16>, vector<2x32xf32> -> vector<2x32xf32>
    %32 = arith.addf %30, %31 : vector<2x32xf32>
    %33 = vector.extract_strided_slice %10 {offsets = [0, 0], sizes = [2, 32], strides = [1, 1]} : vector<16x32xf32> to vector<2x32xf32>
    %cst_23 = arith.constant dense<0.000000e+00> : vector<2x32xf32>
    %34 = tpu.matmul %23, %18, %cst_23 {dimension_numbers = #tpu.dot_dimension_numbers<[1], [0], [0], [1], [0, 0, 1, 1], [], []>} : vector<2x32xbf16>, vector<32x32xbf16>, vector<2x32xf32> -> vector<2x32xf32>
    %35 = arith.addf %33, %34 : vector<2x32xf32>
    %36 = arith.negf %26 : vector<2x32xf32>
    %37 = math.exp %36 : vector<2x32xf32>
    %cst_24 = arith.constant 1.000000e+00 : f32
    %38 = vector.broadcast %cst_24 : f32 to vector<2x32xf32>
    %39 = arith.addf %38, %37 : vector<2x32xf32>
    %40 = arith.divf %38, %39 : vector<2x32xf32>
    %41 = arith.negf %29 : vector<2x32xf32>
    %42 = math.exp %41 : vector<2x32xf32>
    %cst_25 = arith.constant 1.000000e+00 : f32
    %43 = vector.broadcast %cst_25 : f32 to vector<2x32xf32>
    %44 = arith.addf %43, %42 : vector<2x32xf32>
    %45 = arith.divf %43, %44 : vector<2x32xf32>
    %46 = math.tanh %32 : vector<2x32xf32>
    %47 = arith.negf %35 : vector<2x32xf32>
    %48 = math.exp %47 : vector<2x32xf32>
    %cst_26 = arith.constant 1.000000e+00 : f32
    %49 = vector.broadcast %cst_26 : f32 to vector<2x32xf32>
    %50 = arith.addf %49, %48 : vector<2x32xf32>
    %51 = arith.divf %49, %50 : vector<2x32xf32>
    %52 = arith.mulf %45, %22 : vector<2x32xf32>
    %53 = arith.mulf %40, %46 : vector<2x32xf32>
    %54 = arith.addf %52, %53 : vector<2x32xf32>
    %55 = math.tanh %54 : vector<2x32xf32>
    %56 = arith.mulf %51, %55 : vector<2x32xf32>
    %c0_27 = arith.constant 0 : index
    %c0_28 = arith.constant 0 : index
    %57 = vector.load %arg11[%c0_27, %c0_28] : memref<16x32xf32, #tpu.memory_space<vmem>>, vector<2x32xf32>
    tpu.vector_store %arg11[%c0_27, %c0_28], %56 {strides = array<i32>} : memref<16x32xf32, #tpu.memory_space<vmem>>, vector<2x32xf32>,
    %58 = arith.truncf %56 : vector<2x32xf32> to vector<2x32xbf16>
    %59 = vector.extract_strided_slice %7 {offsets = [2, 0], sizes = [2, 32], strides = [1, 1]} : vector<16x32xf32> to vector<2x32xf32>
    %cst_29 = arith.constant dense<0.000000e+00> : vector<2x32xf32>
    %60 = tpu.matmul %58, %12, %cst_29 {dimension_numbers = #tpu.dot_dimension_numbers<[1], [0], [0], [1], [0, 0, 1, 1], [], []>} : vector<2x32xbf16>, vector<32x32xbf16>, vector<2x32xf32> -> vector<2x32xf32>
    %61 = arith.addf %59, %60 : vector<2x32xf32>
    %62 = vector.extract_strided_slice %8 {offsets = [2, 0], sizes = [2, 32], strides = [1, 1]} : vector<16x32xf32> to vector<2x32xf32>
    %cst_30 = arith.constant dense<0.000000e+00> : vector<2x32xf32>
    %63 = tpu.matmul %58, %14, %cst_30 {dimension_numbers = #tpu.dot_dimension_numbers<[1], [0], [0], [1], [0, 0, 1, 1], [], []>} : vector<2x32xbf16>, vector<32x32xbf16>, vector<2x32xf32> -> vector<2x32xf32>
    %64 = arith.addf %62, %63 : vector<2x32xf32>
    %65 = vector.extract_strided_slice %9 {offsets = [2, 0], sizes = [2, 32], strides = [1, 1]} : vector<16x32xf32> to vector<2x32xf32>
    %cst_31 = arith.constant dense<0.000000e+00> : vector<2x32xf32>
    %66 = tpu.matmul %58, %16, %cst_31 {dimension_numbers = #tpu.dot_dimension_numbers<[1], [0], [0], [1], [0, 0, 1, 1], [], []>} : vector<2x32xbf16>, vector<32x32xbf16>, vector<2x32xf32> -> vector<2x32xf32>
    %67 = arith.addf %65, %66 : vector<2x32xf32>
    %68 = vector.extract_strided_slice %10 {offsets = [2, 0], sizes = [2, 32], strides = [1, 1]} : vector<16x32xf32> to vector<2x32xf32>
    %cst_32 = arith.constant dense<0.000000e+00> : vector<2x32xf32>
    %69 = tpu.matmul %58, %18, %cst_32 {dimension_numbers = #tpu.dot_dimension_numbers<[1], [0], [0], [1], [0, 0, 1, 1], [], []>} : vector<2x32xbf16>, vector<32x32xbf16>, vector<2x32xf32> -> vector<2x32xf32>
    %70 = arith.addf %68, %69 : vector<2x32xf32>
    %71 = arith.negf %61 : vector<2x32xf32>
    %72 = math.exp %71 : vector<2x32xf32>
    %cst_33 = arith.constant 1.000000e+00 : f32
    %73 = vector.broadcast %cst_33 : f32 to vector<2x32xf32>
    %74 = arith.addf %73, %72 : vector<2x32xf32>
    %75 = arith.divf %73, %74 : vector<2x32xf32>
    %76 = arith.negf %64 : vector<2x32xf32>
    %77 = math.exp %76 : vector<2x32xf32>
    %cst_34 = arith.constant 1.000000e+00 : f32
    %78 = vector.broadcast %cst_34 : f32 to vector<2x32xf32>
    %79 = arith.addf %78, %77 : vector<2x32xf32>
    %80 = arith.divf %78, %79 : vector<2x32xf32>
    %81 = math.tanh %67 : vector<2x32xf32>
    %82 = arith.negf %70 : vector<2x32xf32>
    %83 = math.exp %82 : vector<2x32xf32>
    %cst_35 = arith.constant 1.000000e+00 : f32
    %84 = vector.broadcast %cst_35 : f32 to vector<2x32xf32>
    %85 = arith.addf %84, %83 : vector<2x32xf32>
    %86 = arith.divf %84, %85 : vector<2x32xf32>
    %87 = arith.mulf %80, %54 : vector<2x32xf32>
    %88 = arith.mulf %75, %81 : vector<2x32xf32>
    %89 = arith.addf %87, %88 : vector<2x32xf32>
    %90 = math.tanh %89 : vector<2x32xf32>
    %91 = arith.mulf %86, %90 : vector<2x32xf32>
    %c2_36 = arith.constant 2 : index
    %c0_37 = arith.constant 0 : index
    %92 = vector.load %arg11[%c2_36, %c0_37] : memref<16x32xf32, #tpu.memory_space<vmem>>, vector<2x32xf32>
    tpu.vector_store %arg11[%c2_36, %c0_37], %91 {strides = array<i32>} : memref<16x32xf32, #tpu.memory_space<vmem>>, vector<2x32xf32>,
    %93 = arith.truncf %91 : vector<2x32xf32> to vector<2x32xbf16>
    %94 = vector.extract_strided_slice %7 {offsets = [4, 0], sizes = [2, 32], strides = [1, 1]} : vector<16x32xf32> to vector<2x32xf32>
    %cst_38 = arith.constant dense<0.000000e+00> : vector<2x32xf32>
    %95 = tpu.matmul %93, %12, %cst_38 {dimension_numbers = #tpu.dot_dimension_numbers<[1], [0], [0], [1], [0, 0, 1, 1], [], []>} : vector<2x32xbf16>, vector<32x32xbf16>, vector<2x32xf32> -> vector<2x32xf32>
    %96 = arith.addf %94, %95 : vector<2x32xf32>
    %97 = vector.extract_strided_slice %8 {offsets = [4, 0], sizes = [2, 32], strides = [1, 1]} : vector<16x32xf32> to vector<2x32xf32>
    %cst_39 = arith.constant dense<0.000000e+00> : vector<2x32xf32>
    %98 = tpu.matmul %93, %14, %cst_39 {dimension_numbers = #tpu.dot_dimension_numbers<[1], [0], [0], [1], [0, 0, 1, 1], [], []>} : vector<2x32xbf16>, vector<32x32xbf16>, vector<2x32xf32> -> vector<2x32xf32>
    %99 = arith.addf %97, %98 : vector<2x32xf32>
    %100 = vector.extract_strided_slice %9 {offsets = [4, 0], sizes = [2, 32], strides = [1, 1]} : vector<16x32xf32> to vector<2x32xf32>
    %cst_40 = arith.constant dense<0.000000e+00> : vector<2x32xf32>
    %101 = tpu.matmul %93, %16, %cst_40 {dimension_numbers = #tpu.dot_dimension_numbers<[1], [0], [0], [1], [0, 0, 1, 1], [], []>} : vector<2x32xbf16>, vector<32x32xbf16>, vector<2x32xf32> -> vector<2x32xf32>
    %102 = arith.addf %100, %101 : vector<2x32xf32>
    %103 = vector.extract_strided_slice %10 {offsets = [4, 0], sizes = [2, 32], strides = [1, 1]} : vector<16x32xf32> to vector<2x32xf32>
    %cst_41 = arith.constant dense<0.000000e+00> : vector<2x32xf32>
    %104 = tpu.matmul %93, %18, %cst_41 {dimension_numbers = #tpu.dot_dimension_numbers<[1], [0], [0], [1], [0, 0, 1, 1], [], []>} : vector<2x32xbf16>, vector<32x32xbf16>, vector<2x32xf32> -> vector<2x32xf32>
    %105 = arith.addf %103, %104 : vector<2x32xf32>
    %106 = arith.negf %96 : vector<2x32xf32>
    %107 = math.exp %106 : vector<2x32xf32>
    %cst_42 = arith.constant 1.000000e+00 : f32
    %108 = vector.broadcast %cst_42 : f32 to vector<2x32xf32>
    %109 = arith.addf %108, %107 : vector<2x32xf32>
    %110 = arith.divf %108, %109 : vector<2x32xf32>
    %111 = arith.negf %99 : vector<2x32xf32>
    %112 = math.exp %111 : vector<2x32xf32>
    %cst_43 = arith.constant 1.000000e+00 : f32
    %113 = vector.broadcast %cst_43 : f32 to vector<2x32xf32>
    %114 = arith.addf %113, %112 : vector<2x32xf32>
    %115 = arith.divf %113, %114 : vector<2x32xf32>
    %116 = math.tanh %102 : vector<2x32xf32>
    %117 = arith.negf %105 : vector<2x32xf32>
    %118 = math.exp %117 : vector<2x32xf32>
    %cst_44 = arith.constant 1.000000e+00 : f32
    %119 = vector.broadcast %cst_44 : f32 to vector<2x32xf32>
    %120 = arith.addf %119, %118 : vector<2x32xf32>
    %121 = arith.divf %119, %120 : vector<2x32xf32>
    %122 = arith.mulf %115, %89 : vector<2x32xf32>
    %123 = arith.mulf %110, %116 : vector<2x32xf32>
    %124 = arith.addf %122, %123 : vector<2x32xf32>
    %125 = math.tanh %124 : vector<2x32xf32>
    %126 = arith.mulf %121, %125 : vector<2x32xf32>
    %c4 = arith.constant 4 : index
    %c0_45 = arith.constant 0 : index
    %127 = vector.load %arg11[%c4, %c0_45] : memref<16x32xf32, #tpu.memory_space<vmem>>, vector<2x32xf32>
    tpu.vector_store %arg11[%c4, %c0_45], %126 {strides = array<i32>} : memref<16x32xf32, #tpu.memory_space<vmem>>, vector<2x32xf32>,
    %128 = arith.truncf %126 : vector<2x32xf32> to vector<2x32xbf16>
    %129 = vector.extract_strided_slice %7 {offsets = [6, 0], sizes = [2, 32], strides = [1, 1]} : vector<16x32xf32> to vector<2x32xf32>
    %cst_46 = arith.constant dense<0.000000e+00> : vector<2x32xf32>
    %130 = tpu.matmul %128, %12, %cst_46 {dimension_numbers = #tpu.dot_dimension_numbers<[1], [0], [0], [1], [0, 0, 1, 1], [], []>} : vector<2x32xbf16>, vector<32x32xbf16>, vector<2x32xf32> -> vector<2x32xf32>
    %131 = arith.addf %129, %130 : vector<2x32xf32>
    %132 = vector.extract_strided_slice %8 {offsets = [6, 0], sizes = [2, 32], strides = [1, 1]} : vector<16x32xf32> to vector<2x32xf32>
    %cst_47 = arith.constant dense<0.000000e+00> : vector<2x32xf32>
    %133 = tpu.matmul %128, %14, %cst_47 {dimension_numbers = #tpu.dot_dimension_numbers<[1], [0], [0], [1], [0, 0, 1, 1], [], []>} : vector<2x32xbf16>, vector<32x32xbf16>, vector<2x32xf32> -> vector<2x32xf32>
    %134 = arith.addf %132, %133 : vector<2x32xf32>
    %135 = vector.extract_strided_slice %9 {offsets = [6, 0], sizes = [2, 32], strides = [1, 1]} : vector<16x32xf32> to vector<2x32xf32>
    %cst_48 = arith.constant dense<0.000000e+00> : vector<2x32xf32>
    %136 = tpu.matmul %128, %16, %cst_48 {dimension_numbers = #tpu.dot_dimension_numbers<[1], [0], [0], [1], [0, 0, 1, 1], [], []>} : vector<2x32xbf16>, vector<32x32xbf16>, vector<2x32xf32> -> vector<2x32xf32>
    %137 = arith.addf %135, %136 : vector<2x32xf32>
    %138 = vector.extract_strided_slice %10 {offsets = [6, 0], sizes = [2, 32], strides = [1, 1]} : vector<16x32xf32> to vector<2x32xf32>
    %cst_49 = arith.constant dense<0.000000e+00> : vector<2x32xf32>
    %139 = tpu.matmul %128, %18, %cst_49 {dimension_numbers = #tpu.dot_dimension_numbers<[1], [0], [0], [1], [0, 0, 1, 1], [], []>} : vector<2x32xbf16>, vector<32x32xbf16>, vector<2x32xf32> -> vector<2x32xf32>
    %140 = arith.addf %138, %139 : vector<2x32xf32>
    %141 = arith.negf %131 : vector<2x32xf32>
    %142 = math.exp %141 : vector<2x32xf32>
    %cst_50 = arith.constant 1.000000e+00 : f32
    %143 = vector.broadcast %cst_50 : f32 to vector<2x32xf32>
    %144 = arith.addf %143, %142 : vector<2x32xf32>
    %145 = arith.divf %143, %144 : vector<2x32xf32>
    %146 = arith.negf %134 : vector<2x32xf32>
    %147 = math.exp %146 : vector<2x32xf32>
    %cst_51 = arith.constant 1.000000e+00 : f32
    %148 = vector.broadcast %cst_51 : f32 to vector<2x32xf32>
    %149 = arith.addf %148, %147 : vector<2x32xf32>
    %150 = arith.divf %148, %149 : vector<2x32xf32>
    %151 = math.tanh %137 : vector<2x32xf32>
    %152 = arith.negf %140 : vector<2x32xf32>
    %153 = math.exp %152 : vector<2x32xf32>
    %cst_52 = arith.constant 1.000000e+00 : f32
    %154 = vector.broadcast %cst_52 : f32 to vector<2x32xf32>
    %155 = arith.addf %154, %153 : vector<2x32xf32>
    %156 = arith.divf %154, %155 : vector<2x32xf32>
    %157 = arith.mulf %150, %124 : vector<2x32xf32>
    %158 = arith.mulf %145, %151 : vector<2x32xf32>
    %159 = arith.addf %157, %158 : vector<2x32xf32>
    %160 = math.tanh %159 : vector<2x32xf32>
    %161 = arith.mulf %156, %160 : vector<2x32xf32>
    %c6 = arith.constant 6 : index
    %c0_53 = arith.constant 0 : index
    %162 = vector.load %arg11[%c6, %c0_53] : memref<16x32xf32, #tpu.memory_space<vmem>>, vector<2x32xf32>
    tpu.vector_store %arg11[%c6, %c0_53], %161 {strides = array<i32>} : memref<16x32xf32, #tpu.memory_space<vmem>>, vector<2x32xf32>,
    %163 = arith.truncf %161 : vector<2x32xf32> to vector<2x32xbf16>
    %164 = vector.extract_strided_slice %7 {offsets = [8, 0], sizes = [2, 32], strides = [1, 1]} : vector<16x32xf32> to vector<2x32xf32>
    %cst_54 = arith.constant dense<0.000000e+00> : vector<2x32xf32>
    %165 = tpu.matmul %163, %12, %cst_54 {dimension_numbers = #tpu.dot_dimension_numbers<[1], [0], [0], [1], [0, 0, 1, 1], [], []>} : vector<2x32xbf16>, vector<32x32xbf16>, vector<2x32xf32> -> vector<2x32xf32>
    %166 = arith.addf %164, %165 : vector<2x32xf32>
    %167 = vector.extract_strided_slice %8 {offsets = [8, 0], sizes = [2, 32], strides = [1, 1]} : vector<16x32xf32> to vector<2x32xf32>
    %cst_55 = arith.constant dense<0.000000e+00> : vector<2x32xf32>
    %168 = tpu.matmul %163, %14, %cst_55 {dimension_numbers = #tpu.dot_dimension_numbers<[1], [0], [0], [1], [0, 0, 1, 1], [], []>} : vector<2x32xbf16>, vector<32x32xbf16>, vector<2x32xf32> -> vector<2x32xf32>
    %169 = arith.addf %167, %168 : vector<2x32xf32>
    %170 = vector.extract_strided_slice %9 {offsets = [8, 0], sizes = [2, 32], strides = [1, 1]} : vector<16x32xf32> to vector<2x32xf32>
    %cst_56 = arith.constant dense<0.000000e+00> : vector<2x32xf32>
    %171 = tpu.matmul %163, %16, %cst_56 {dimension_numbers = #tpu.dot_dimension_numbers<[1], [0], [0], [1], [0, 0, 1, 1], [], []>} : vector<2x32xbf16>, vector<32x32xbf16>, vector<2x32xf32> -> vector<2x32xf32>
    %172 = arith.addf %170, %171 : vector<2x32xf32>
    %173 = vector.extract_strided_slice %10 {offsets = [8, 0], sizes = [2, 32], strides = [1, 1]} : vector<16x32xf32> to vector<2x32xf32>
    %cst_57 = arith.constant dense<0.000000e+00> : vector<2x32xf32>
    %174 = tpu.matmul %163, %18, %cst_57 {dimension_numbers = #tpu.dot_dimension_numbers<[1], [0], [0], [1], [0, 0, 1, 1], [], []>} : vector<2x32xbf16>, vector<32x32xbf16>, vector<2x32xf32> -> vector<2x32xf32>
    %175 = arith.addf %173, %174 : vector<2x32xf32>
    %176 = arith.negf %166 : vector<2x32xf32>
    %177 = math.exp %176 : vector<2x32xf32>
    %cst_58 = arith.constant 1.000000e+00 : f32
    %178 = vector.broadcast %cst_58 : f32 to vector<2x32xf32>
    %179 = arith.addf %178, %177 : vector<2x32xf32>
    %180 = arith.divf %178, %179 : vector<2x32xf32>
    %181 = arith.negf %169 : vector<2x32xf32>
    %182 = math.exp %181 : vector<2x32xf32>
    %cst_59 = arith.constant 1.000000e+00 : f32
    %183 = vector.broadcast %cst_59 : f32 to vector<2x32xf32>
    %184 = arith.addf %183, %182 : vector<2x32xf32>
    %185 = arith.divf %183, %184 : vector<2x32xf32>
    %186 = math.tanh %172 : vector<2x32xf32>
    %187 = arith.negf %175 : vector<2x32xf32>
    %188 = math.exp %187 : vector<2x32xf32>
    %cst_60 = arith.constant 1.000000e+00 : f32
    %189 = vector.broadcast %cst_60 : f32 to vector<2x32xf32>
    %190 = arith.addf %189, %188 : vector<2x32xf32>
    %191 = arith.divf %189, %190 : vector<2x32xf32>
    %192 = arith.mulf %185, %159 : vector<2x32xf32>
    %193 = arith.mulf %180, %186 : vector<2x32xf32>
    %194 = arith.addf %192, %193 : vector<2x32xf32>
    %195 = math.tanh %194 : vector<2x32xf32>
    %196 = arith.mulf %191, %195 : vector<2x32xf32>
    %c8 = arith.constant 8 : index
    %c0_61 = arith.constant 0 : index
    %197 = vector.load %arg11[%c8, %c0_61] : memref<16x32xf32, #tpu.memory_space<vmem>>, vector<2x32xf32>
    tpu.vector_store %arg11[%c8, %c0_61], %196 {strides = array<i32>} : memref<16x32xf32, #tpu.memory_space<vmem>>, vector<2x32xf32>,
    %198 = arith.truncf %196 : vector<2x32xf32> to vector<2x32xbf16>
    %199 = vector.extract_strided_slice %7 {offsets = [10, 0], sizes = [2, 32], strides = [1, 1]} : vector<16x32xf32> to vector<2x32xf32>
    %cst_62 = arith.constant dense<0.000000e+00> : vector<2x32xf32>
    %200 = tpu.matmul %198, %12, %cst_62 {dimension_numbers = #tpu.dot_dimension_numbers<[1], [0], [0], [1], [0, 0, 1, 1], [], []>} : vector<2x32xbf16>, vector<32x32xbf16>, vector<2x32xf32> -> vector<2x32xf32>
    %201 = arith.addf %199, %200 : vector<2x32xf32>
    %202 = vector.extract_strided_slice %8 {offsets = [10, 0], sizes = [2, 32], strides = [1, 1]} : vector<16x32xf32> to vector<2x32xf32>
    %cst_63 = arith.constant dense<0.000000e+00> : vector<2x32xf32>
    %203 = tpu.matmul %198, %14, %cst_63 {dimension_numbers = #tpu.dot_dimension_numbers<[1], [0], [0], [1], [0, 0, 1, 1], [], []>} : vector<2x32xbf16>, vector<32x32xbf16>, vector<2x32xf32> -> vector<2x32xf32>
    %204 = arith.addf %202, %203 : vector<2x32xf32>
    %205 = vector.extract_strided_slice %9 {offsets = [10, 0], sizes = [2, 32], strides = [1, 1]} : vector<16x32xf32> to vector<2x32xf32>
    %cst_64 = arith.constant dense<0.000000e+00> : vector<2x32xf32>
    %206 = tpu.matmul %198, %16, %cst_64 {dimension_numbers = #tpu.dot_dimension_numbers<[1], [0], [0], [1], [0, 0, 1, 1], [], []>} : vector<2x32xbf16>, vector<32x32xbf16>, vector<2x32xf32> -> vector<2x32xf32>
    %207 = arith.addf %205, %206 : vector<2x32xf32>
    %208 = vector.extract_strided_slice %10 {offsets = [10, 0], sizes = [2, 32], strides = [1, 1]} : vector<16x32xf32> to vector<2x32xf32>
    %cst_65 = arith.constant dense<0.000000e+00> : vector<2x32xf32>
    %209 = tpu.matmul %198, %18, %cst_65 {dimension_numbers = #tpu.dot_dimension_numbers<[1], [0], [0], [1], [0, 0, 1, 1], [], []>} : vector<2x32xbf16>, vector<32x32xbf16>, vector<2x32xf32> -> vector<2x32xf32>
    %210 = arith.addf %208, %209 : vector<2x32xf32>
    %211 = arith.negf %201 : vector<2x32xf32>
    %212 = math.exp %211 : vector<2x32xf32>
    %cst_66 = arith.constant 1.000000e+00 : f32
    %213 = vector.broadcast %cst_66 : f32 to vector<2x32xf32>
    %214 = arith.addf %213, %212 : vector<2x32xf32>
    %215 = arith.divf %213, %214 : vector<2x32xf32>
    %216 = arith.negf %204 : vector<2x32xf32>
    %217 = math.exp %216 : vector<2x32xf32>
    %cst_67 = arith.constant 1.000000e+00 : f32
    %218 = vector.broadcast %cst_67 : f32 to vector<2x32xf32>
    %219 = arith.addf %218, %217 : vector<2x32xf32>
    %220 = arith.divf %218, %219 : vector<2x32xf32>
    %221 = math.tanh %207 : vector<2x32xf32>
    %222 = arith.negf %210 : vector<2x32xf32>
    %223 = math.exp %222 : vector<2x32xf32>
    %cst_68 = arith.constant 1.000000e+00 : f32
    %224 = vector.broadcast %cst_68 : f32 to vector<2x32xf32>
    %225 = arith.addf %224, %223 : vector<2x32xf32>
    %226 = arith.divf %224, %225 : vector<2x32xf32>
    %227 = arith.mulf %220, %194 : vector<2x32xf32>
    %228 = arith.mulf %215, %221 : vector<2x32xf32>
    %229 = arith.addf %227, %228 : vector<2x32xf32>
    %230 = math.tanh %229 : vector<2x32xf32>
    %231 = arith.mulf %226, %230 : vector<2x32xf32>
    %c10 = arith.constant 10 : index
    %c0_69 = arith.constant 0 : index
    %232 = vector.load %arg11[%c10, %c0_69] : memref<16x32xf32, #tpu.memory_space<vmem>>, vector<2x32xf32>
    tpu.vector_store %arg11[%c10, %c0_69], %231 {strides = array<i32>} : memref<16x32xf32, #tpu.memory_space<vmem>>, vector<2x32xf32>,
    %233 = arith.truncf %231 : vector<2x32xf32> to vector<2x32xbf16>
    %234 = vector.extract_strided_slice %7 {offsets = [12, 0], sizes = [2, 32], strides = [1, 1]} : vector<16x32xf32> to vector<2x32xf32>
    %cst_70 = arith.constant dense<0.000000e+00> : vector<2x32xf32>
    %235 = tpu.matmul %233, %12, %cst_70 {dimension_numbers = #tpu.dot_dimension_numbers<[1], [0], [0], [1], [0, 0, 1, 1], [], []>} : vector<2x32xbf16>, vector<32x32xbf16>, vector<2x32xf32> -> vector<2x32xf32>
    %236 = arith.addf %234, %235 : vector<2x32xf32>
    %237 = vector.extract_strided_slice %8 {offsets = [12, 0], sizes = [2, 32], strides = [1, 1]} : vector<16x32xf32> to vector<2x32xf32>
    %cst_71 = arith.constant dense<0.000000e+00> : vector<2x32xf32>
    %238 = tpu.matmul %233, %14, %cst_71 {dimension_numbers = #tpu.dot_dimension_numbers<[1], [0], [0], [1], [0, 0, 1, 1], [], []>} : vector<2x32xbf16>, vector<32x32xbf16>, vector<2x32xf32> -> vector<2x32xf32>
    %239 = arith.addf %237, %238 : vector<2x32xf32>
    %240 = vector.extract_strided_slice %9 {offsets = [12, 0], sizes = [2, 32], strides = [1, 1]} : vector<16x32xf32> to vector<2x32xf32>
    %cst_72 = arith.constant dense<0.000000e+00> : vector<2x32xf32>
    %241 = tpu.matmul %233, %16, %cst_72 {dimension_numbers = #tpu.dot_dimension_numbers<[1], [0], [0], [1], [0, 0, 1, 1], [], []>} : vector<2x32xbf16>, vector<32x32xbf16>, vector<2x32xf32> -> vector<2x32xf32>
    %242 = arith.addf %240, %241 : vector<2x32xf32>
    %243 = vector.extract_strided_slice %10 {offsets = [12, 0], sizes = [2, 32], strides = [1, 1]} : vector<16x32xf32> to vector<2x32xf32>
    %cst_73 = arith.constant dense<0.000000e+00> : vector<2x32xf32>
    %244 = tpu.matmul %233, %18, %cst_73 {dimension_numbers = #tpu.dot_dimension_numbers<[1], [0], [0], [1], [0, 0, 1, 1], [], []>} : vector<2x32xbf16>, vector<32x32xbf16>, vector<2x32xf32> -> vector<2x32xf32>
    %245 = arith.addf %243, %244 : vector<2x32xf32>
    %246 = arith.negf %236 : vector<2x32xf32>
    %247 = math.exp %246 : vector<2x32xf32>
    %cst_74 = arith.constant 1.000000e+00 : f32
    %248 = vector.broadcast %cst_74 : f32 to vector<2x32xf32>
    %249 = arith.addf %248, %247 : vector<2x32xf32>
    %250 = arith.divf %248, %249 : vector<2x32xf32>
    %251 = arith.negf %239 : vector<2x32xf32>
    %252 = math.exp %251 : vector<2x32xf32>
    %cst_75 = arith.constant 1.000000e+00 : f32
    %253 = vector.broadcast %cst_75 : f32 to vector<2x32xf32>
    %254 = arith.addf %253, %252 : vector<2x32xf32>
    %255 = arith.divf %253, %254 : vector<2x32xf32>
    %256 = math.tanh %242 : vector<2x32xf32>
    %257 = arith.negf %245 : vector<2x32xf32>
    %258 = math.exp %257 : vector<2x32xf32>
    %cst_76 = arith.constant 1.000000e+00 : f32
    %259 = vector.broadcast %cst_76 : f32 to vector<2x32xf32>
    %260 = arith.addf %259, %258 : vector<2x32xf32>
    %261 = arith.divf %259, %260 : vector<2x32xf32>
    %262 = arith.mulf %255, %229 : vector<2x32xf32>
    %263 = arith.mulf %250, %256 : vector<2x32xf32>
    %264 = arith.addf %262, %263 : vector<2x32xf32>
    %265 = math.tanh %264 : vector<2x32xf32>
    %266 = arith.mulf %261, %265 : vector<2x32xf32>
    %c12 = arith.constant 12 : index
    %c0_77 = arith.constant 0 : index
    %267 = vector.load %arg11[%c12, %c0_77] : memref<16x32xf32, #tpu.memory_space<vmem>>, vector<2x32xf32>
    tpu.vector_store %arg11[%c12, %c0_77], %266 {strides = array<i32>} : memref<16x32xf32, #tpu.memory_space<vmem>>, vector<2x32xf32>,
    %268 = arith.truncf %266 : vector<2x32xf32> to vector<2x32xbf16>
    %269 = vector.extract_strided_slice %7 {offsets = [14, 0], sizes = [2, 32], strides = [1, 1]} : vector<16x32xf32> to vector<2x32xf32>
    %cst_78 = arith.constant dense<0.000000e+00> : vector<2x32xf32>
    %270 = tpu.matmul %268, %12, %cst_78 {dimension_numbers = #tpu.dot_dimension_numbers<[1], [0], [0], [1], [0, 0, 1, 1], [], []>} : vector<2x32xbf16>, vector<32x32xbf16>, vector<2x32xf32> -> vector<2x32xf32>
    %271 = arith.addf %269, %270 : vector<2x32xf32>
    %272 = vector.extract_strided_slice %8 {offsets = [14, 0], sizes = [2, 32], strides = [1, 1]} : vector<16x32xf32> to vector<2x32xf32>
    %cst_79 = arith.constant dense<0.000000e+00> : vector<2x32xf32>
    %273 = tpu.matmul %268, %14, %cst_79 {dimension_numbers = #tpu.dot_dimension_numbers<[1], [0], [0], [1], [0, 0, 1, 1], [], []>} : vector<2x32xbf16>, vector<32x32xbf16>, vector<2x32xf32> -> vector<2x32xf32>
    %274 = arith.addf %272, %273 : vector<2x32xf32>
    %275 = vector.extract_strided_slice %9 {offsets = [14, 0], sizes = [2, 32], strides = [1, 1]} : vector<16x32xf32> to vector<2x32xf32>
    %cst_80 = arith.constant dense<0.000000e+00> : vector<2x32xf32>
    %276 = tpu.matmul %268, %16, %cst_80 {dimension_numbers = #tpu.dot_dimension_numbers<[1], [0], [0], [1], [0, 0, 1, 1], [], []>} : vector<2x32xbf16>, vector<32x32xbf16>, vector<2x32xf32> -> vector<2x32xf32>
    %277 = arith.addf %275, %276 : vector<2x32xf32>
    %278 = vector.extract_strided_slice %10 {offsets = [14, 0], sizes = [2, 32], strides = [1, 1]} : vector<16x32xf32> to vector<2x32xf32>
    %cst_81 = arith.constant dense<0.000000e+00> : vector<2x32xf32>
    %279 = tpu.matmul %268, %18, %cst_81 {dimension_numbers = #tpu.dot_dimension_numbers<[1], [0], [0], [1], [0, 0, 1, 1], [], []>} : vector<2x32xbf16>, vector<32x32xbf16>, vector<2x32xf32> -> vector<2x32xf32>
    %280 = arith.addf %278, %279 : vector<2x32xf32>
    %281 = arith.negf %271 : vector<2x32xf32>
    %282 = math.exp %281 : vector<2x32xf32>
    %cst_82 = arith.constant 1.000000e+00 : f32
    %283 = vector.broadcast %cst_82 : f32 to vector<2x32xf32>
    %284 = arith.addf %283, %282 : vector<2x32xf32>
    %285 = arith.divf %283, %284 : vector<2x32xf32>
    %286 = arith.negf %274 : vector<2x32xf32>
    %287 = math.exp %286 : vector<2x32xf32>
    %cst_83 = arith.constant 1.000000e+00 : f32
    %288 = vector.broadcast %cst_83 : f32 to vector<2x32xf32>
    %289 = arith.addf %288, %287 : vector<2x32xf32>
    %290 = arith.divf %288, %289 : vector<2x32xf32>
    %291 = math.tanh %277 : vector<2x32xf32>
    %292 = arith.negf %280 : vector<2x32xf32>
    %293 = math.exp %292 : vector<2x32xf32>
    %cst_84 = arith.constant 1.000000e+00 : f32
    %294 = vector.broadcast %cst_84 : f32 to vector<2x32xf32>
    %295 = arith.addf %294, %293 : vector<2x32xf32>
    %296 = arith.divf %294, %295 : vector<2x32xf32>
    %297 = arith.mulf %290, %264 : vector<2x32xf32>
    %298 = arith.mulf %285, %291 : vector<2x32xf32>
    %299 = arith.addf %297, %298 : vector<2x32xf32>
    %300 = math.tanh %299 : vector<2x32xf32>
    %301 = arith.mulf %296, %300 : vector<2x32xf32>
    %c14 = arith.constant 14 : index
    %c0_85 = arith.constant 0 : index
    %302 = vector.load %arg11[%c14, %c0_85] : memref<16x32xf32, #tpu.memory_space<vmem>>, vector<2x32xf32>
    tpu.vector_store %arg11[%c14, %c0_85], %301 {strides = array<i32>} : memref<16x32xf32, #tpu.memory_space<vmem>>, vector<2x32xf32>,
    %c0_86 = arith.constant 0 : index
    %c0_87 = arith.constant 0 : index
    %c0_88 = arith.constant 0 : index
    %303 = vector.load %arg9[%c0_86, %c0_87, %c0_88] : memref<1x2x32xf32, #tpu.memory_space<vmem>>, vector<1x2x32xf32>
    %304 = vector.shape_cast %303 : vector<1x2x32xf32> to vector<2x32xf32>
    %305 = vector.shape_cast %301 : vector<2x32xf32> to vector<1x2x32xf32>
    tpu.vector_store %arg9[%c0_86, %c0_87, %c0_88], %305 {strides = array<i32>} : memref<1x2x32xf32, #tpu.memory_space<vmem>>, vector<1x2x32xf32>,
    %c0_89 = arith.constant 0 : index
    %c0_90 = arith.constant 0 : index
    %c0_91 = arith.constant 0 : index
    %306 = vector.load %arg10[%c0_89, %c0_90, %c0_91] : memref<1x2x32xf32, #tpu.memory_space<vmem>>, vector<1x2x32xf32>
    %307 = vector.shape_cast %306 : vector<1x2x32xf32> to vector<2x32xf32>
    %308 = vector.shape_cast %299 : vector<2x32xf32> to vector<1x2x32xf32>
    tpu.vector_store %arg10[%c0_89, %c0_90, %c0_91], %308 {strides = array<i32>} : memref<1x2x32xf32, #tpu.memory_space<vmem>>, vector<1x2x32xf32>,
    %c0_92 = arith.constant 0 : index
    %c0_93 = arith.constant 0 : index
    %309 = vector.load %arg11[%c0_92, %c0_93] : memref<16x32xf32, #tpu.memory_space<vmem>>, vector<16x32xf32>
    %310 = arith.truncf %309 : vector<16x32xf32> to vector<16x32xbf16>
    %c0_94 = arith.constant 0 : index
    %c0_95 = arith.constant 0 : index
    %311 = vector.load %arg4[%c0_94, %c0_95] : memref<32x16xbf16, #tpu.memory_space<vmem>>, vector<32x16xbf16>
    %cst_96 = arith.constant dense<0.000000e+00> : vector<16x16xf32>
    %312 = tpu.matmul %310, %311, %cst_96 {dimension_numbers = #tpu.dot_dimension_numbers<[1], [0], [0], [1], [0, 0, 1, 1], [], []>} : vector<16x32xbf16>, vector<32x16xbf16>, vector<16x16xf32> -> vector<16x16xf32>
    %c0_97 = arith.constant 0 : index
    %c0_98 = arith.constant 0 : index
    %313 = vector.load %arg5[%c0_97, %c0_98] : memref<1x16xf32, #tpu.memory_space<vmem>>, vector<1x16xf32>
    %314 = vector.broadcast %313 : vector<1x16xf32> to vector<16x16xf32>
    %315 = arith.addf %312, %314 : vector<16x16xf32>
    %c0_99 = arith.constant 0 : index
    %c0_100 = arith.constant 0 : index
    %316 = vector.load %arg8[%c0_99, %c0_100] : memref<16x16xf32, #tpu.memory_space<vmem>>, vector<16x16xf32>
    tpu.vector_store %arg8[%c0_99, %c0_100], %315 {strides = array<i32>} : memref<16x16xf32, #tpu.memory_space<vmem>>, vector<16x16xf32>,
    return
  }
}

</mosaic_0001>

<llo_original>
// kernel: tpu_custom_call.1
$region0: #{tpu_custom_call.1}
  #allocation0 [shape = 'u32[]', space=smem, size = 0x4, offset = 0x4, fixed_abs, tag = 'smem constant byte address 0x4 - core index']
  #allocation1 [shape = 'u32[144,128]{1,0:T(1,128)}', space=vmem, size = 0x12000, scoped, tag = 'internal scratch']
  #allocation2 [shape = 'f32[16,32]{1,0:T(8,128)}', space=vmem, size = 0x2000, scoped, tag = 'scratch operand']
  %s0 = inlined_call_operand.vmem [shape: f32[16,32], index: 0, kind: input, shape index: {}]
  %s1 = inlined_call_operand.hbm [shape: bf16[32,128], index: 1, kind: input, shape index: {}]
  %s2 = inlined_call_operand.hbm [shape: bf16[4,32,32], index: 2, kind: input, shape index: {}]
  %s3 = inlined_call_operand.vmem [shape: f32[1,128], index: 3, kind: input, shape index: {}]
  %s4 = inlined_call_operand.vmem [shape: bf16[32,16], index: 4, kind: input, shape index: {}]
  %s5 = inlined_call_operand.vmem [shape: f32[1,16], index: 5, kind: input, shape index: {}]
  %s6 = inlined_call_operand.vmem [shape: f32[1,2,32], index: 6, kind: input, shape index: {}]
  %s7 = inlined_call_operand.vmem [shape: f32[1,2,32], index: 7, kind: input, shape index: {}]
  %s8 = inlined_call_operand.hbm [shape: f32[16,16], index: 8, kind: output, shape index: {0}]
  %s9 = inlined_call_operand.hbm [shape: f32[1,2,32], index: 9, kind: output, shape index: {1}]
  %s10 = inlined_call_operand.hbm [shape: f32[1,2,32], index: 10, kind: output, shape index: {2}]
  %11 = xla_tuple %s8, %s9, %s10
  %s12 = sld [smem:[#allocation0]]
  $region66: #{tpu_custom_call.1} parent=0
    _
  %s14 = ssub.s32 1, %s12
  %s15 = scalar_select 0, %s14, %s12
  $region1: #{tpu_custom_call.1} parent=0
    #allocation3 [shape = 'u8[8192]{0}', space=vmem, size = 0x2000, scoped, tag = 'input window, operand 1, single buffered']
    #allocation4 [shape = 's32[1]{0}', space=sflag, size = 0x4, scoped, tag = 'scoped memory for tpu_custom_call.1']
    #allocation5 [shape = 's32[1]{0}', space=sflag, size = 0x4, scoped, tag = 'scoped memory for tpu_custom_call.1']
    #allocation6 [shape = 'u8[32768]{0}', space=vmem, size = 0x8000, scoped, tag = 'input window, operand 2, single buffered']
    #allocation7 [shape = 's32[1]{0}', space=sflag, size = 0x4, scoped, tag = 'scoped memory for tpu_custom_call.1']
    #allocation8 [shape = 'u8[8192]{0}', space=vmem, size = 0x2000, scoped, tag = 'output window, operand 0, single buffered']
    #allocation9 [shape = 'u8[1024]{0}', space=vmem, size = 0x400, scoped, tag = 'output window, operand 1, single buffered']
    #allocation10 [shape = 's32[1]{0}', space=sflag, size = 0x4, scoped, tag = 'scoped memory for tpu_custom_call.1']
    #allocation11 [shape = 'u8[1024]{0}', space=vmem, size = 0x400, scoped, tag = 'output window, operand 2, single buffered']
    %16 = vsyncpa [#allocation4], 0
    %17 = vsyncpa [#allocation7], 0
    %18 = vsyncpa [#allocation5], 0
    %19 = vsyncpa [#allocation10], 0
    // Predicated region
    $region2: #{tpu_custom_call.1} parent=1 // pred_check
      _
    $region3: #{tpu_custom_call.1} parent=1 // pred_check_branch
      %21 = sbr.rel (0) target = $region5
    $region4: #{tpu_custom_call.1} parent=1 // pred_region
      _
    $region5: #{tpu_custom_call.1} parent=1 // pred_fallthru
      _
    // Predicated region
    $region6: #{tpu_custom_call.1} parent=1 // pred_check
      _
    $region7: #{tpu_custom_call.1} parent=1 // pred_check_branch
      %23 = sbr.rel (0) target = $region9
    $region8: #{tpu_custom_call.1} parent=1 // pred_region
      %s25 = ssub.s32 256, 256
      %26 = vsyncadd [#allocation4], %s25
      %s27 = sshll.u32 [#allocation3], 4
      %s28 = int_to_ptr.vmem [resolvable:$true] %s27
      %33 = dma.hbm_to_vmem [thread:$0]  %s1, 256, %s28, [#allocation4], 64, 64, 4
    $region9: #{tpu_custom_call.1} parent=1 // pred_fallthru
      _
    // Predicated region
    $region10: #{tpu_custom_call.1} parent=1 // pred_check
      _
    $region11: #{tpu_custom_call.1} parent=1 // pred_check_branch
      %35 = sbr.rel (0) target = $region13
    $region12: #{tpu_custom_call.1} parent=1 // pred_region
      %s37 = ssub.s32 1024, 1024
      %38 = vsyncadd [#allocation7], %s37
      %s39 = sshll.u32 [#allocation6], 4
      %s40 = int_to_ptr.vmem [resolvable:$true] %s39
      %45 = dma.hbm_to_vmem [thread:$0]  %s2, 1024, %s40, [#allocation7], 64, 64, 4
    $region13: #{tpu_custom_call.1} parent=1 // pred_fallthru
      _
    // Predicated region
    $region14: #{tpu_custom_call.1} parent=1 // pred_check
      _
    $region15: #{tpu_custom_call.1} parent=1 // pred_check_branch
      %47 = sbr.rel (0) target = $region17
    $region16: #{tpu_custom_call.1} parent=1 // pred_region
      _
    $region17: #{tpu_custom_call.1} parent=1 // pred_fallthru
      _
    // Predicated region
    $region18: #{tpu_custom_call.1} parent=1 // pred_check
      _
    $region19: #{tpu_custom_call.1} parent=1 // pred_check_branch
      %49 = sbr.rel (0) target = $region21
    $region20: #{tpu_custom_call.1} parent=1 // pred_region
      _
    $region21: #{tpu_custom_call.1} parent=1 // pred_fallthru
      _
    // Predicated region
    $region22: #{tpu_custom_call.1} parent=1 // pred_check
      _
    $region23: #{tpu_custom_call.1} parent=1 // pred_check_branch
      %51 = sbr.rel (0) target = $region25
    $region24: #{tpu_custom_call.1} parent=1 // pred_region
      _
    $region25: #{tpu_custom_call.1} parent=1 // pred_fallthru
      _
    // Predicated region
    $region26: #{tpu_custom_call.1} parent=1 // pred_check
      _
    $region27: #{tpu_custom_call.1} parent=1 // pred_check_branch
      %53 = sbr.rel (0) target = $region29
    $region28: #{tpu_custom_call.1} parent=1 // pred_region
      _
    $region29: #{tpu_custom_call.1} parent=1 // pred_fallthru
      _
    // Predicated region
    $region30: #{tpu_custom_call.1} parent=1 // pred_check
      _
    $region31: #{tpu_custom_call.1} parent=1 // pred_check_branch
      %55 = sbr.rel (0) target = $region33
    $region32: #{tpu_custom_call.1} parent=1 // pred_region
      _
    $region33: #{tpu_custom_call.1} parent=1 // pred_fallthru
      _
    // Predicated region
    $region34: #{tpu_custom_call.1} parent=1 // pred_check
      _
    $region35: #{tpu_custom_call.1} parent=1 // pred_check_branch
      %57 = sbr.rel (0) target = $region37
    $region36: #{tpu_custom_call.1} parent=1 // pred_region
      %58 = dma.done [#allocation4], 256
    $region37: #{tpu_custom_call.1} parent=1 // pred_fallthru
      _
    // Predicated region
    $region38: #{tpu_custom_call.1} parent=1 // pred_check
      _
    $region39: #{tpu_custom_call.1} parent=1 // pred_check_branch
      %60 = sbr.rel (0) target = $region41
    $region40: #{tpu_custom_call.1} parent=1 // pred_region
      %61 = dma.done [#allocation7], 1024
    $region41: #{tpu_custom_call.1} parent=1 // pred_fallthru
      _
    %v63 = vld [vmem:[%s0] sm:$0xff]
    %v64 = vld [vmem:[%s0 + $0x8] sm:$0xff]
    %v65 = vpack.c.bf16 %v64, %v63
    %v66 = vld [vmem:[#allocation3] sm:$0xf]
    %v67 = vld [vmem:[#allocation3 + $0x4] sm:$0xf]
    %v68 = vld [vmem:[#allocation3 + $0x8] sm:$0xf]
    %v69 = vld [vmem:[#allocation3 + $0xc] sm:$0xf]
    %v70 = vld [vmem:[%s3] sm:$0x1]
    %v72 = vlaneseq
    %v73 = vshrl.u32 %v72, 7
    %v74 = vsub.s32 0, %v73
    %v75 = vrot.slane %v70, %v74
    %v81 = vunpack.c.l.b16 %v66
    %v82 = vunpack.c.l.b16 %v67
    %v83 = vunpack.c.l.b16 %v68
    %v84 = vunpack.c.l.b16 %v69
    %v85 = vpack.c.b16 %v82, %v81
    %v86 = vpack.c.b16 %v84, %v83
    %vm89 = vcmask 261120
    %v91 = vsel %vm89, %v65, 0
    %93 = vmatprep.subr.bf16.mxu0 0
    %94 = vmatpush1.bf16.msra.mxu0 %v85
    %95 = vmatprep.subr.bf16.mxu0 0
    %96 = vmatpush1.bf16.msra.mxu0 %v86
    %97 = vmatprep.subr.bf16.mxu0 0
    %98 = vmatpush1.bf16.msra.mxu0 0
    %99 = vmatprep.subr.bf16.mxu0 0
    %100 = vmatpush1.bf16.msra.mxu0 0
    %101 = vmatprep.subr.bf16.mxu0 0
    %102 = vmatpush1.bf16.msra.mxu0 0
    %103 = vmatprep.subr.bf16.mxu0 0
    %104 = vmatpush1.bf16.msra.mxu0 0
    %105 = vmatprep.subr.bf16.mxu0 0
    %106 = vmatpush1.bf16.msra.mxu0 0
    %107 = vmatprep.subr.bf16.mxu0 0
    %108 = vmatpush1.bf16.msra.mxu0 0
    %109 = vmatprep.subr.bf16.mxu0 0
    %110 = vmatpush1.bf16.msra.mxu0 0
    %111 = vmatprep.subr.bf16.mxu0 0
    %112 = vmatpush1.bf16.msra.mxu0 0
    %113 = vmatprep.subr.bf16.mxu0 0
    %114 = vmatpush1.bf16.msra.mxu0 0
    %115 = vmatprep.subr.bf16.mxu0 0
    %116 = vmatpush1.bf16.msra.mxu0 0
    %117 = vmatprep.subr.bf16.mxu0 0
    %118 = vmatpush1.bf16.msra.mxu0 0
    %119 = vmatprep.subr.bf16.mxu0 0
    %120 = vmatpush1.bf16.msra.mxu0 0
    %121 = vmatprep.subr.bf16.mxu0 0
    %122 = vmatpush1.bf16.msra.mxu0 0
    %123 = vmatprep.subr.bf16.mxu0 0
    %124 = vmatpush1.bf16.msra.mxu0 0
    %125 = vmatprep.mubr.bf16.mxu0 0
    %126 = vmatmul.mubr.bf16.gmra.mrb[0].mxu0 %v91
    %v127 = vpop.f32.mrb[0].mxu0
    %v128 = vadd.f32 %v75, %v127
    %v129 = vpop.f32.mrb[0].mxu0
    %v130 = vpop.f32.mrb[0].mxu0
    %v131 = vadd.f32 %v75, %v130
    %v132 = vpop.f32.mrb[0].mxu0
    %133 = vdwg.mxu0
    %v134 = vld [vmem:[#allocation6] sm:$0xf]
    %v135 = vld [vmem:[#allocation6 + $0x4] sm:$0xf]
    %v136 = vld [vmem:[#allocation6 + $0x8] sm:$0xf]
    %v137 = vld [vmem:[#allocation6 + $0xc] sm:$0xf]
    %s138 = scalar_lea.vmem [#allocation6], 16
    %v139 = vld [vmem:[%s138] sm:$0xf]
    %v140 = vld [vmem:[%s138 + $0x4] sm:$0xf]
    %v141 = vld [vmem:[%s138 + $0x8] sm:$0xf]
    %v142 = vld [vmem:[%s138 + $0xc] sm:$0xf]
    %s143 = scalar_lea.vmem [#allocation6], 32
    %v144 = vld [vmem:[%s143] sm:$0xf]
    %v145 = vld [vmem:[%s143 + $0x4] sm:$0xf]
    %v146 = vld [vmem:[%s143 + $0x8] sm:$0xf]
    %v147 = vld [vmem:[%s143 + $0xc] sm:$0xf]
    %s148 = scalar_lea.vmem [#allocation6], 48
    %v149 = vld [vmem:[%s148] sm:$0xf]
    %v150 = vld [vmem:[%s148 + $0x4] sm:$0xf]
    %v151 = vld [vmem:[%s148 + $0x8] sm:$0xf]
    %v152 = vld [vmem:[%s148 + $0xc] sm:$0xf]
    %v153 = vld [vmem:[%s6] sm:$0x3]
    %v154 = vld [vmem:[%s7] sm:$0x3]
    %v155 = vpack.c.bf16 %v153, %v153
    %v160 = vunpack.c.l.b16 %v134
    %v161 = vunpack.c.l.b16 %v135
    %v162 = vunpack.c.l.b16 %v136
    %v163 = vunpack.c.l.b16 %v137
    %v164 = vpack.c.b16 %v161, %v160
    %v165 = vpack.c.b16 %v163, %v162
    %v169 = vsel %vm89, %v155, 0
    %171 = vmatprep.subr.bf16.mxu0 0
    %172 = vmatpush1.bf16.msra.mxu0 %v164
    %173 = vmatprep.subr.bf16.mxu0 0
    %174 = vmatpush1.bf16.msra.mxu0 %v165
    %175 = vmatprep.subr.bf16.mxu0 0
    %176 = vmatpush1.bf16.msra.mxu0 0
    %177 = vmatprep.subr.bf16.mxu0 0
    %178 = vmatpush1.bf16.msra.mxu0 0
    %179 = vmatprep.subr.bf16.mxu0 0
    %180 = vmatpush1.bf16.msra.mxu0 0
    %181 = vmatprep.subr.bf16.mxu0 0
    %182 = vmatpush1.bf16.msra.mxu0 0
    %183 = vmatprep.subr.bf16.mxu0 0
    %184 = vmatpush1.bf16.msra.mxu0 0
    %185 = vmatprep.subr.bf16.mxu0 0
    %186 = vmatpush1.bf16.msra.mxu0 0
    %187 = vmatprep.subr.bf16.mxu0 0
    %188 = vmatpush1.bf16.msra.mxu0 0
    %189 = vmatprep.subr.bf16.mxu0 0
    %190 = vmatpush1.bf16.msra.mxu0 0
    %191 = vmatprep.subr.bf16.mxu0 0
    %192 = vmatpush1.bf16.msra.mxu0 0
    %193 = vmatprep.subr.bf16.mxu0 0
    %194 = vmatpush1.bf16.msra.mxu0 0
    %195 = vmatprep.subr.bf16.mxu0 0
    %196 = vmatpush1.bf16.msra.mxu0 0
    %197 = vmatprep.subr.bf16.mxu0 0
    %198 = vmatpush1.bf16.msra.mxu0 0
    %199 = vmatprep.subr.bf16.mxu0 0
    %200 = vmatpush1.bf16.msra.mxu0 0
    %201 = vmatprep.subr.bf16.mxu0 0
    %202 = vmatpush1.bf16.msra.mxu0 0
    %203 = vmatprep.mubr.bf16.mxu0 0
    %204 = vmatmul.mubr.bf16.gmra.mrb[0].mxu0 %v169
    %v205 = vpop.f32.mrb[0].mxu0
    %v206 = vadd.f32 0.0, %v205
    %v207 = vpop.f32.mrb[0].mxu0
    %v208 = vpop.f32.mrb[0].mxu0
    %v209 = vpop.f32.mrb[0].mxu0
    %210 = vdwg.mxu0
    %v211 = vadd.f32 %v128, %v206
    %v216 = vunpack.c.l.b16 %v139
    %v217 = vunpack.c.l.b16 %v140
    %v218 = vunpack.c.l.b16 %v141
    %v219 = vunpack.c.l.b16 %v142
    %v220 = vpack.c.b16 %v217, %v216
    %v221 = vpack.c.b16 %v219, %v218
    %224 = vmatprep.subr.bf16.mxu0 0
    %225 = vmatpush1.bf16.msra.mxu0 %v220
    %226 = vmatprep.subr.bf16.mxu0 0
    %227 = vmatpush1.bf16.msra.mxu0 %v221
    %228 = vmatprep.subr.bf16.mxu0 0
    %229 = vmatpush1.bf16.msra.mxu0 0
    %230 = vmatprep.subr.bf16.mxu0 0
    %231 = vmatpush1.bf16.msra.mxu0 0
    %232 = vmatprep.subr.bf16.mxu0 0
    %233 = vmatpush1.bf16.msra.mxu0 0
    %234 = vmatprep.subr.bf16.mxu0 0
    %235 = vmatpush1.bf16.msra.mxu0 0
    %236 = vmatprep.subr.bf16.mxu0 0
    %237 = vmatpush1.bf16.msra.mxu0 0
    %238 = vmatprep.subr.bf16.mxu0 0
    %239 = vmatpush1.bf16.msra.mxu0 0
    %240 = vmatprep.subr.bf16.mxu0 0
    %241 = vmatpush1.bf16.msra.mxu0 0
    %242 = vmatprep.subr.bf16.mxu0 0
    %243 = vmatpush1.bf16.msra.mxu0 0
    %244 = vmatprep.subr.bf16.mxu0 0
    %245 = vmatpush1.bf16.msra.mxu0 0
    %246 = vmatprep.subr.bf16.mxu0 0
    %247 = vmatpush1.bf16.msra.mxu0 0
    %248 = vmatprep.subr.bf16.mxu0 0
    %249 = vmatpush1.bf16.msra.mxu0 0
    %250 = vmatprep.subr.bf16.mxu0 0
    %251 = vmatpush1.bf16.msra.mxu0 0
    %252 = vmatprep.subr.bf16.mxu0 0
    %253 = vmatpush1.bf16.msra.mxu0 0
    %254 = vmatprep.subr.bf16.mxu0 0
    %255 = vmatpush1.bf16.msra.mxu0 0
    %256 = vmatprep.mubr.bf16.mxu0 0
    %257 = vmatmul.mubr.bf16.gmra.mrb[0].mxu0 %v169
    %v258 = vpop.f32.mrb[0].mxu0
    %v259 = vadd.f32 0.0, %v258
    %v260 = vpop.f32.mrb[0].mxu0
    %v261 = vpop.f32.mrb[0].mxu0
    %v262 = vpop.f32.mrb[0].mxu0
    %263 = vdwg.mxu0
    %265 = vrot.lane.b32.xlu0 %v259, 32
    %v266 = vpop.permute.xlu0 %265
    %v268 = vadd.f32 %v128, %v266
    %v273 = vunpack.c.l.b16 %v144
    %v274 = vunpack.c.l.b16 %v145
    %v275 = vunpack.c.l.b16 %v146
    %v276 = vunpack.c.l.b16 %v147
    %v277 = vpack.c.b16 %v274, %v273
    %v278 = vpack.c.b16 %v276, %v275
    %281 = vmatprep.subr.bf16.mxu0 0
    %282 = vmatpush1.bf16.msra.mxu0 %v277
    %283 = vmatprep.subr.bf16.mxu0 0
    %284 = vmatpush1.bf16.msra.mxu0 %v278
    %285 = vmatprep.subr.bf16.mxu0 0
    %286 = vmatpush1.bf16.msra.mxu0 0
    %287 = vmatprep.subr.bf16.mxu0 0
    %288 = vmatpush1.bf16.msra.mxu0 0
    %289 = vmatprep.subr.bf16.mxu0 0
    %290 = vmatpush1.bf16.msra.mxu0 0
    %291 = vmatprep.subr.bf16.mxu0 0
    %292 = vmatpush1.bf16.msra.mxu0 0
    %293 = vmatprep.subr.bf16.mxu0 0
    %294 = vmatpush1.bf16.msra.mxu0 0
    %295 = vmatprep.subr.bf16.mxu0 0
    %296 = vmatpush1.bf16.msra.mxu0 0
    %297 = vmatprep.subr.bf16.mxu0 0
    %298 = vmatpush1.bf16.msra.mxu0 0
    %299 = vmatprep.subr.bf16.mxu0 0
    %300 = vmatpush1.bf16.msra.mxu0 0
    %301 = vmatprep.subr.bf16.mxu0 0
    %302 = vmatpush1.bf16.msra.mxu0 0
    %303 = vmatprep.subr.bf16.mxu0 0
    %304 = vmatpush1.bf16.msra.mxu0 0
    %305 = vmatprep.subr.bf16.mxu0 0
    %306 = vmatpush1.bf16.msra.mxu0 0
    %307 = vmatprep.subr.bf16.mxu0 0
    %308 = vmatpush1.bf16.msra.mxu0 0
    %309 = vmatprep.subr.bf16.mxu0 0
    %310 = vmatpush1.bf16.msra.mxu0 0
    %311 = vmatprep.subr.bf16.mxu0 0
    %312 = vmatpush1.bf16.msra.mxu0 0
    %313 = vmatprep.mubr.bf16.mxu0 0
    %314 = vmatmul.mubr.bf16.gmra.mrb[0].mxu0 %v169
    %v315 = vpop.f32.mrb[0].mxu0
    %v316 = vadd.f32 0.0, %v315
    %v317 = vpop.f32.mrb[0].mxu0
    %v318 = vpop.f32.mrb[0].mxu0
    %v319 = vpop.f32.mrb[0].mxu0
    %320 = vdwg.mxu0
    %322 = vrot.lane.b32.xlu0 %v316, 64
    %v323 = vpop.permute.xlu0 %322
    %v325 = vadd.f32 %v128, %v323
    %v330 = vunpack.c.l.b16 %v149
    %v331 = vunpack.c.l.b16 %v150
    %v332 = vunpack.c.l.b16 %v151
    %v333 = vunpack.c.l.b16 %v152
    %v334 = vpack.c.b16 %v331, %v330
    %v335 = vpack.c.b16 %v333, %v332
    %338 = vmatprep.subr.bf16.mxu0 0
    %339 = vmatpush1.bf16.msra.mxu0 %v334
    %340 = vmatprep.subr.bf16.mxu0 0
    %341 = vmatpush1.bf16.msra.mxu0 %v335
    %342 = vmatprep.subr.bf16.mxu0 0
    %343 = vmatpush1.bf16.msra.mxu0 0
    %344 = vmatprep.subr.bf16.mxu0 0
    %345 = vmatpush1.bf16.msra.mxu0 0
    %346 = vmatprep.subr.bf16.mxu0 0
    %347 = vmatpush1.bf16.msra.mxu0 0
    %348 = vmatprep.subr.bf16.mxu0 0
    %349 = vmatpush1.bf16.msra.mxu0 0
    %350 = vmatprep.subr.bf16.mxu0 0
    %351 = vmatpush1.bf16.msra.mxu0 0
    %352 = vmatprep.subr.bf16.mxu0 0
    %353 = vmatpush1.bf16.msra.mxu0 0
    %354 = vmatprep.subr.bf16.mxu0 0
    %355 = vmatpush1.bf16.msra.mxu0 0
    %356 = vmatprep.subr.bf16.mxu0 0
    %357 = vmatpush1.bf16.msra.mxu0 0
    %358 = vmatprep.subr.bf16.mxu0 0
    %359 = vmatpush1.bf16.msra.mxu0 0
    %360 = vmatprep.subr.bf16.mxu0 0
    %361 = vmatpush1.bf16.msra.mxu0 0
    %362 = vmatprep.subr.bf16.mxu0 0
    %363 = vmatpush1.bf16.msra.mxu0 0
    %364 = vmatprep.subr.bf16.mxu0 0
    %365 = vmatpush1.bf16.msra.mxu0 0
    %366 = vmatprep.subr.bf16.mxu0 0
    %367 = vmatpush1.bf16.msra.mxu0 0
    %368 = vmatprep.subr.bf16.mxu0 0
    %369 = vmatpush1.bf16.msra.mxu0 0
    %370 = vmatprep.mubr.bf16.mxu0 0
    %371 = vmatmul.mubr.bf16.gmra.mrb[0].mxu0 %v169
    %v372 = vpop.f32.mrb[0].mxu0
    %v373 = vadd.f32 0.0, %v372
    %v374 = vpop.f32.mrb[0].mxu0
    %v375 = vpop.f32.mrb[0].mxu0
    %v376 = vpop.f32.mrb[0].mxu0
    %377 = vdwg.mxu0
    %379 = vrot.lane.b32.xlu0 %v373, 96
    %v380 = vpop.permute.xlu0 %379
    %v382 = vadd.f32 %v128, %v380
    %v383 = vxor.u32 %v211, 2147483648
    %v384 = vmul.f32 %v383, 1.442695
    %v385 = vpow.pop %v384
    %v386 = vadd.f32 %v385, 1.0
    %v387 = vrcp.pop %v386
    %v388 = vmul.f32 1.0, %v387
    %v389 = vxor.u32 %v268, 2147483648
    %v390 = vmul.f32 %v389, 1.442695
    %v391 = vpow.pop %v390
    %v392 = vadd.f32 %v391, 1.0
    %v393 = vrcp.pop %v392
    %v394 = vmul.f32 1.0, %v393
    %v395 = vtanh.pop %v325
    %v396 = vxor.u32 %v382, 2147483648
    %v397 = vmul.f32 %v396, 1.442695
    %v398 = vpow.pop %v397
    %v399 = vadd.f32 %v398, 1.0
    %v400 = vrcp.pop %v399
    %v401 = vmul.f32 1.0, %v400
    %403 = vrot.lane.b32.xlu0 %v154, 32
    %v404 = vpop.permute.xlu0 %403
    %v406 = vmul.f32 %v394, %v404
    %408 = vrot.lane.b32.xlu0 %v395, 64
    %v409 = vpop.permute.xlu0 %408
    %v411 = vmul.f32 %v388, %v409
    %413 = vrot.lane.b32.xlu0 %v411, 32
    %v414 = vpop.permute.xlu0 %413
    %v416 = vadd.f32 %v406, %v414
    %v417 = vtanh.pop %v416
    %419 = vrot.lane.b32.xlu0 %v417, 64
    %v420 = vpop.permute.xlu0 %419
    %v422 = vmul.f32 %v401, %v420
    %424 = vrot.lane.b32.xlu0 %v422, 32
    %v425 = vpop.permute.xlu0 %424
    %vm427 = vcmask 254976
    %428 = vst.msk [vmem:[#allocation2] sm:$0x3] %vm427, %v425
    %v429 = vpack.c.bf16 %v422, %v422
    %431 = vrot.lane.b32.xlu0 %v429, 32
    %v432 = vpop.permute.xlu0 %431
    %v434 = vsel %vm89, %v432, 0
    %436 = vmatprep.subr.bf16.mxu0 0
    %437 = vmatpush1.bf16.msra.mxu0 %v164
    %438 = vmatprep.subr.bf16.mxu0 0
    %439 = vmatpush1.bf16.msra.mxu0 %v165
    %440 = vmatprep.subr.bf16.mxu0 0
    %441 = vmatpush1.bf16.msra.mxu0 0
    %442 = vmatprep.subr.bf16.mxu0 0
    %443 = vmatpush1.bf16.msra.mxu0 0
    %444 = vmatprep.subr.bf16.mxu0 0
    %445 = vmatpush1.bf16.msra.mxu0 0
    %446 = vmatprep.subr.bf16.mxu0 0
    %447 = vmatpush1.bf16.msra.mxu0 0
    %448 = vmatprep.subr.bf16.mxu0 0
    %449 = vmatpush1.bf16.msra.mxu0 0
    %450 = vmatprep.subr.bf16.mxu0 0
    %451 = vmatpush1.bf16.msra.mxu0 0
    %452 = vmatprep.subr.bf16.mxu0 0
    %453 = vmatpush1.bf16.msra.mxu0 0
    %454 = vmatprep.subr.bf16.mxu0 0
    %455 = vmatpush1.bf16.msra.mxu0 0
    %456 = vmatprep.subr.bf16.mxu0 0
    %457 = vmatpush1.bf16.msra.mxu0 0
    %458 = vmatprep.subr.bf16.mxu0 0
    %459 = vmatpush1.bf16.msra.mxu0 0
    %460 = vmatprep.subr.bf16.mxu0 0
    %461 = vmatpush1.bf16.msra.mxu0 0
    %462 = vmatprep.subr.bf16.mxu0 0
    %463 = vmatpush1.bf16.msra.mxu0 0
    %464 = vmatprep.subr.bf16.mxu0 0
    %465 = vmatpush1.bf16.msra.mxu0 0
    %466 = vmatprep.subr.bf16.mxu0 0
    %467 = vmatpush1.bf16.msra.mxu0 0
    %468 = vmatprep.mubr.bf16.mxu0 0
    %469 = vmatmul.mubr.bf16.gmra.mrb[0].mxu0 %v434
    %v470 = vpop.f32.mrb[0].mxu0
    %v471 = vadd.f32 0.0, %v470
    %v472 = vpop.f32.mrb[0].mxu0
    %v473 = vpop.f32.mrb[0].mxu0
    %v474 = vpop.f32.mrb[0].mxu0
    %475 = vdwg.mxu0
    %v477 = vrot.slane %v471, 6
    %v479 = vadd.f32 %v128, %v477
    %480 = vmatprep.subr.bf16.mxu0 0
    %481 = vmatpush1.bf16.msra.mxu0 %v220
    %482 = vmatprep.subr.bf16.mxu0 0
    %483 = vmatpush1.bf16.msra.mxu0 %v221
    %484 = vmatprep.subr.bf16.mxu0 0
    %485 = vmatpush1.bf16.msra.mxu0 0
    %486 = vmatprep.subr.bf16.mxu0 0
    %487 = vmatpush1.bf16.msra.mxu0 0
    %488 = vmatprep.subr.bf16.mxu0 0
    %489 = vmatpush1.bf16.msra.mxu0 0
    %490 = vmatprep.subr.bf16.mxu0 0
    %491 = vmatpush1.bf16.msra.mxu0 0
    %492 = vmatprep.subr.bf16.mxu0 0
    %493 = vmatpush1.bf16.msra.mxu0 0
    %494 = vmatprep.subr.bf16.mxu0 0
    %495 = vmatpush1.bf16.msra.mxu0 0
    %496 = vmatprep.subr.bf16.mxu0 0
    %497 = vmatpush1.bf16.msra.mxu0 0
    %498 = vmatprep.subr.bf16.mxu0 0
    %499 = vmatpush1.bf16.msra.mxu0 0
    %500 = vmatprep.subr.bf16.mxu0 0
    %501 = vmatpush1.bf16.msra.mxu0 0
    %502 = vmatprep.subr.bf16.mxu0 0
    %503 = vmatpush1.bf16.msra.mxu0 0
    %504 = vmatprep.subr.bf16.mxu0 0
    %505 = vmatpush1.bf16.msra.mxu0 0
    %506 = vmatprep.subr.bf16.mxu0 0
    %507 = vmatpush1.bf16.msra.mxu0 0
    %508 = vmatprep.subr.bf16.mxu0 0
    %509 = vmatpush1.bf16.msra.mxu0 0
    %510 = vmatprep.subr.bf16.mxu0 0
    %511 = vmatpush1.bf16.msra.mxu0 0
    %512 = vmatprep.mubr.bf16.mxu0 0
    %513 = vmatmul.mubr.bf16.gmra.mrb[0].mxu0 %v434
    %v514 = vpop.f32.mrb[0].mxu0
    %v515 = vadd.f32 0.0, %v514
    %v516 = vpop.f32.mrb[0].mxu0
    %v517 = vpop.f32.mrb[0].mxu0
    %v518 = vpop.f32.mrb[0].mxu0
    %519 = vdwg.mxu0
    %v521 = vrot.slane %v515, 6
    %522 = vrot.lane.b32.xlu0 %v521, 32
    %v523 = vpop.permute.xlu0 %522
    %v525 = vadd.f32 %v128, %v523
    %526 = vmatprep.subr.bf16.mxu0 0
    %527 = vmatpush1.bf16.msra.mxu0 %v277
    %528 = vmatprep.subr.bf16.mxu0 0
    %529 = vmatpush1.bf16.msra.mxu0 %v278
    %530 = vmatprep.subr.bf16.mxu0 0
    %531 = vmatpush1.bf16.msra.mxu0 0
    %532 = vmatprep.subr.bf16.mxu0 0
    %533 = vmatpush1.bf16.msra.mxu0 0
    %534 = vmatprep.subr.bf16.mxu0 0
    %535 = vmatpush1.bf16.msra.mxu0 0
    %536 = vmatprep.subr.bf16.mxu0 0
    %537 = vmatpush1.bf16.msra.mxu0 0
    %538 = vmatprep.subr.bf16.mxu0 0
    %539 = vmatpush1.bf16.msra.mxu0 0
    %540 = vmatprep.subr.bf16.mxu0 0
    %541 = vmatpush1.bf16.msra.mxu0 0
    %542 = vmatprep.subr.bf16.mxu0 0
    %543 = vmatpush1.bf16.msra.mxu0 0
    %544 = vmatprep.subr.bf16.mxu0 0
    %545 = vmatpush1.bf16.msra.mxu0 0
    %546 = vmatprep.subr.bf16.mxu0 0
    %547 = vmatpush1.bf16.msra.mxu0 0
    %548 = vmatprep.subr.bf16.mxu0 0
    %549 = vmatpush1.bf16.msra.mxu0 0
    %550 = vmatprep.subr.bf16.mxu0 0
    %551 = vmatpush1.bf16.msra.mxu0 0
    %552 = vmatprep.subr.bf16.mxu0 0
    %553 = vmatpush1.bf16.msra.mxu0 0
    %554 = vmatprep.subr.bf16.mxu0 0
    %555 = vmatpush1.bf16.msra.mxu0 0
    %556 = vmatprep.subr.bf16.mxu0 0
    %557 = vmatpush1.bf16.msra.mxu0 0
    %558 = vmatprep.mubr.bf16.mxu0 0
    %559 = vmatmul.mubr.bf16.gmra.mrb[0].mxu0 %v434
    %v560 = vpop.f32.mrb[0].mxu0
    %v561 = vadd.f32 0.0, %v560
    %v562 = vpop.f32.mrb[0].mxu0
    %v563 = vpop.f32.mrb[0].mxu0
    %v564 = vpop.f32.mrb[0].mxu0
    %565 = vdwg.mxu0
    %v567 = vrot.slane %v561, 6
    %568 = vrot.lane.b32.xlu0 %v567, 64
    %v569 = vpop.permute.xlu0 %568
    %v571 = vadd.f32 %v128, %v569
    %572 = vmatprep.subr.bf16.mxu0 0
    %573 = vmatpush1.bf16.msra.mxu0 %v334
    %574 = vmatprep.subr.bf16.mxu0 0
    %575 = vmatpush1.bf16.msra.mxu0 %v335
    %576 = vmatprep.subr.bf16.mxu0 0
    %577 = vmatpush1.bf16.msra.mxu0 0
    %578 = vmatprep.subr.bf16.mxu0 0
    %579 = vmatpush1.bf16.msra.mxu0 0
    %580 = vmatprep.subr.bf16.mxu0 0
    %581 = vmatpush1.bf16.msra.mxu0 0
    %582 = vmatprep.subr.bf16.mxu0 0
    %583 = vmatpush1.bf16.msra.mxu0 0
    %584 = vmatprep.subr.bf16.mxu0 0
    %585 = vmatpush1.bf16.msra.mxu0 0
    %586 = vmatprep.subr.bf16.mxu0 0
    %587 = vmatpush1.bf16.msra.mxu0 0
    %588 = vmatprep.subr.bf16.mxu0 0
    %589 = vmatpush1.bf16.msra.mxu0 0
    %590 = vmatprep.subr.bf16.mxu0 0
    %591 = vmatpush1.bf16.msra.mxu0 0
    %592 = vmatprep.subr.bf16.mxu0 0
    %593 = vmatpush1.bf16.msra.mxu0 0
    %594 = vmatprep.subr.bf16.mxu0 0
    %595 = vmatpush1.bf16.msra.mxu0 0
    %596 = vmatprep.subr.bf16.mxu0 0
    %597 = vmatpush1.bf16.msra.mxu0 0
    %598 = vmatprep.subr.bf16.mxu0 0
    %599 = vmatpush1.bf16.msra.mxu0 0
    %600 = vmatprep.subr.bf16.mxu0 0
    %601 = vmatpush1.bf16.msra.mxu0 0
    %602 = vmatprep.subr.bf16.mxu0 0
    %603 = vmatpush1.bf16.msra.mxu0 0
    %604 = vmatprep.mubr.bf16.mxu0 0
    %605 = vmatmul.mubr.bf16.gmra.mrb[0].mxu0 %v434
    %v606 = vpop.f32.mrb[0].mxu0
    %v607 = vadd.f32 0.0, %v606
    %v608 = vpop.f32.mrb[0].mxu0
    %v609 = vpop.f32.mrb[0].mxu0
    %v610 = vpop.f32.mrb[0].mxu0
    %611 = vdwg.mxu0
    %v613 = vrot.slane %v607, 6
    %614 = vrot.lane.b32.xlu0 %v613, 96
    %v615 = vpop.permute.xlu0 %614
    %v617 = vadd.f32 %v128, %v615
    %v618 = vxor.u32 %v479, 2147483648
    %v619 = vmul.f32 %v618, 1.442695
    %v620 = vpow.pop %v619
    %v621 = vadd.f32 %v620, 1.0
    %v622 = vrcp.pop %v621
    %v623 = vmul.f32 1.0, %v622
    %v624 = vxor.u32 %v525, 2147483648
    %v625 = vmul.f32 %v624, 1.442695
    %v626 = vpow.pop %v625
    %v627 = vadd.f32 %v626, 1.0
    %v628 = vrcp.pop %v627
    %v629 = vmul.f32 1.0, %v628
    %v630 = vtanh.pop %v571
    %v631 = vxor.u32 %v617, 2147483648
    %v632 = vmul.f32 %v631, 1.442695
    %v633 = vpow.pop %v632
    %v634 = vadd.f32 %v633, 1.0
    %v635 = vrcp.pop %v634
    %v636 = vmul.f32 1.0, %v635
    %v638 = vrot.slane %v416, 6
    %v640 = vmul.f32 %v629, %v638
    %642 = vrot.lane.b32.xlu0 %v630, 64
    %v643 = vpop.permute.xlu0 %642
    %v645 = vmul.f32 %v623, %v643
    %647 = vrot.lane.b32.xlu0 %v645, 32
    %v648 = vpop.permute.xlu0 %647
    %v650 = vadd.f32 %v640, %v648
    %v651 = vtanh.pop %v650
    %653 = vrot.lane.b32.xlu0 %v651, 64
    %v654 = vpop.permute.xlu0 %653
    %v656 = vmul.f32 %v636, %v654
    %658 = vrot.lane.b32.xlu0 %v656, 32
    %v659 = vpop.permute.xlu0 %658
    %vm661 = vcmask 257026
    %662 = vst.msk [vmem:[#allocation2] sm:$0xc] %vm661, %v659
    %v663 = vpack.c.bf16 %v656, %v656
    %v665 = vrot.slane %v663, 1
    %666 = vrot.lane.b32.xlu0 %v665, 32
    %v667 = vpop.permute.xlu0 %666
    %v669 = vsel %vm89, %v667, 0
    %671 = vmatprep.subr.bf16.mxu0 0
    %672 = vmatpush1.bf16.msra.mxu0 %v164
    %673 = vmatprep.subr.bf16.mxu0 0
    %674 = vmatpush1.bf16.msra.mxu0 %v165
    %675 = vmatprep.subr.bf16.mxu0 0
    %676 = vmatpush1.bf16.msra.mxu0 0
    %677 = vmatprep.subr.bf16.mxu0 0
    %678 = vmatpush1.bf16.msra.mxu0 0
    %679 = vmatprep.subr.bf16.mxu0 0
    %680 = vmatpush1.bf16.msra.mxu0 0
    %681 = vmatprep.subr.bf16.mxu0 0
    %682 = vmatpush1.bf16.msra.mxu0 0
    %683 = vmatprep.subr.bf16.mxu0 0
    %684 = vmatpush1.bf16.msra.mxu0 0
    %685 = vmatprep.subr.bf16.mxu0 0
    %686 = vmatpush1.bf16.msra.mxu0 0
    %687 = vmatprep.subr.bf16.mxu0 0
    %688 = vmatpush1.bf16.msra.mxu0 0
    %689 = vmatprep.subr.bf16.mxu0 0
    %690 = vmatpush1.bf16.msra.mxu0 0
    %691 = vmatprep.subr.bf16.mxu0 0
    %692 = vmatpush1.bf16.msra.mxu0 0
    %693 = vmatprep.subr.bf16.mxu0 0
    %694 = vmatpush1.bf16.msra.mxu0 0
    %695 = vmatprep.subr.bf16.mxu0 0
    %696 = vmatpush1.bf16.msra.mxu0 0
    %697 = vmatprep.subr.bf16.mxu0 0
    %698 = vmatpush1.bf16.msra.mxu0 0
    %699 = vmatprep.subr.bf16.mxu0 0
    %700 = vmatpush1.bf16.msra.mxu0 0
    %701 = vmatprep.subr.bf16.mxu0 0
    %702 = vmatpush1.bf16.msra.mxu0 0
    %703 = vmatprep.mubr.bf16.mxu0 0
    %704 = vmatmul.mubr.bf16.gmra.mrb[0].mxu0 %v669
    %v705 = vpop.f32.mrb[0].mxu0
    %v706 = vadd.f32 0.0, %v705
    %v707 = vpop.f32.mrb[0].mxu0
    %v708 = vpop.f32.mrb[0].mxu0
    %v709 = vpop.f32.mrb[0].mxu0
    %710 = vdwg.mxu0
    %v712 = vrot.slane %v706, 4
    %v714 = vadd.f32 %v128, %v712
    %715 = vmatprep.subr.bf16.mxu0 0
    %716 = vmatpush1.bf16.msra.mxu0 %v220
    %717 = vmatprep.subr.bf16.mxu0 0
    %718 = vmatpush1.bf16.msra.mxu0 %v221
    %719 = vmatprep.subr.bf16.mxu0 0
    %720 = vmatpush1.bf16.msra.mxu0 0
    %721 = vmatprep.subr.bf16.mxu0 0
    %722 = vmatpush1.bf16.msra.mxu0 0
    %723 = vmatprep.subr.bf16.mxu0 0
    %724 = vmatpush1.bf16.msra.mxu0 0
    %725 = vmatprep.subr.bf16.mxu0 0
    %726 = vmatpush1.bf16.msra.mxu0 0
    %727 = vmatprep.subr.bf16.mxu0 0
    %728 = vmatpush1.bf16.msra.mxu0 0
    %729 = vmatprep.subr.bf16.mxu0 0
    %730 = vmatpush1.bf16.msra.mxu0 0
    %731 = vmatprep.subr.bf16.mxu0 0
    %732 = vmatpush1.bf16.msra.mxu0 0
    %733 = vmatprep.subr.bf16.mxu0 0
    %734 = vmatpush1.bf16.msra.mxu0 0
    %735 = vmatprep.subr.bf16.mxu0 0
    %736 = vmatpush1.bf16.msra.mxu0 0
    %737 = vmatprep.subr.bf16.mxu0 0
    %738 = vmatpush1.bf16.msra.mxu0 0
    %739 = vmatprep.subr.bf16.mxu0 0
    %740 = vmatpush1.bf16.msra.mxu0 0
    %741 = vmatprep.subr.bf16.mxu0 0
    %742 = vmatpush1.bf16.msra.mxu0 0
    %743 = vmatprep.subr.bf16.mxu0 0
    %744 = vmatpush1.bf16.msra.mxu0 0
    %745 = vmatprep.subr.bf16.mxu0 0
    %746 = vmatpush1.bf16.msra.mxu0 0
    %747 = vmatprep.mubr.bf16.mxu0 0
    %748 = vmatmul.mubr.bf16.gmra.mrb[0].mxu0 %v669
    %v749 = vpop.f32.mrb[0].mxu0
    %v750 = vadd.f32 0.0, %v749
    %v751 = vpop.f32.mrb[0].mxu0
    %v752 = vpop.f32.mrb[0].mxu0
    %v753 = vpop.f32.mrb[0].mxu0
    %754 = vdwg.mxu0
    %v756 = vrot.slane %v750, 4
    %757 = vrot.lane.b32.xlu0 %v756, 32
    %v758 = vpop.permute.xlu0 %757
    %v760 = vadd.f32 %v128, %v758
    %761 = vmatprep.subr.bf16.mxu0 0
    %762 = vmatpush1.bf16.msra.mxu0 %v277
    %763 = vmatprep.subr.bf16.mxu0 0
    %764 = vmatpush1.bf16.msra.mxu0 %v278
    %765 = vmatprep.subr.bf16.mxu0 0
    %766 = vmatpush1.bf16.msra.mxu0 0
    %767 = vmatprep.subr.bf16.mxu0 0
    %768 = vmatpush1.bf16.msra.mxu0 0
    %769 = vmatprep.subr.bf16.mxu0 0
    %770 = vmatpush1.bf16.msra.mxu0 0
    %771 = vmatprep.subr.bf16.mxu0 0
    %772 = vmatpush1.bf16.msra.mxu0 0
    %773 = vmatprep.subr.bf16.mxu0 0
    %774 = vmatpush1.bf16.msra.mxu0 0
    %775 = vmatprep.subr.bf16.mxu0 0
    %776 = vmatpush1.bf16.msra.mxu0 0
    %777 = vmatprep.subr.bf16.mxu0 0
    %778 = vmatpush1.bf16.msra.mxu0 0
    %779 = vmatprep.subr.bf16.mxu0 0
    %780 = vmatpush1.bf16.msra.mxu0 0
    %781 = vmatprep.subr.bf16.mxu0 0
    %782 = vmatpush1.bf16.msra.mxu0 0
    %783 = vmatprep.subr.bf16.mxu0 0
    %784 = vmatpush1.bf16.msra.mxu0 0
    %785 = vmatprep.subr.bf16.mxu0 0
    %786 = vmatpush1.bf16.msra.mxu0 0
    %787 = vmatprep.subr.bf16.mxu0 0
    %788 = vmatpush1.bf16.msra.mxu0 0
    %789 = vmatprep.subr.bf16.mxu0 0
    %790 = vmatpush1.bf16.msra.mxu0 0
    %791 = vmatprep.subr.bf16.mxu0 0
    %792 = vmatpush1.bf16.msra.mxu0 0
    %793 = vmatprep.mubr.bf16.mxu0 0
    %794 = vmatmul.mubr.bf16.gmra.mrb[0].mxu0 %v669
    %v795 = vpop.f32.mrb[0].mxu0
    %v796 = vadd.f32 0.0, %v795
    %v797 = vpop.f32.mrb[0].mxu0
    %v798 = vpop.f32.mrb[0].mxu0
    %v799 = vpop.f32.mrb[0].mxu0
    %800 = vdwg.mxu0
    %v802 = vrot.slane %v796, 4
    %803 = vrot.lane.b32.xlu0 %v802, 64
    %v804 = vpop.permute.xlu0 %803
    %v806 = vadd.f32 %v128, %v804
    %807 = vmatprep.subr.bf16.mxu0 0
    %808 = vmatpush1.bf16.msra.mxu0 %v334
    %809 = vmatprep.subr.bf16.mxu0 0
    %810 = vmatpush1.bf16.msra.mxu0 %v335
    %811 = vmatprep.subr.bf16.mxu0 0
    %812 = vmatpush1.bf16.msra.mxu0 0
    %813 = vmatprep.subr.bf16.mxu0 0
    %814 = vmatpush1.bf16.msra.mxu0 0
    %815 = vmatprep.subr.bf16.mxu0 0
    %816 = vmatpush1.bf16.msra.mxu0 0
    %817 = vmatprep.subr.bf16.mxu0 0
    %818 = vmatpush1.bf16.msra.mxu0 0
    %819 = vmatprep.subr.bf16.mxu0 0
    %820 = vmatpush1.bf16.msra.mxu0 0
    %821 = vmatprep.subr.bf16.mxu0 0
    %822 = vmatpush1.bf16.msra.mxu0 0
    %823 = vmatprep.subr.bf16.mxu0 0
    %824 = vmatpush1.bf16.msra.mxu0 0
    %825 = vmatprep.subr.bf16.mxu0 0
    %826 = vmatpush1.bf16.msra.mxu0 0
    %827 = vmatprep.subr.bf16.mxu0 0
    %828 = vmatpush1.bf16.msra.mxu0 0
    %829 = vmatprep.subr.bf16.mxu0 0
    %830 = vmatpush1.bf16.msra.mxu0 0
    %831 = vmatprep.subr.bf16.mxu0 0
    %832 = vmatpush1.bf16.msra.mxu0 0
    %833 = vmatprep.subr.bf16.mxu0 0
    %834 = vmatpush1.bf16.msra.mxu0 0
    %835 = vmatprep.subr.bf16.mxu0 0
    %836 = vmatpush1.bf16.msra.mxu0 0
    %837 = vmatprep.subr.bf16.mxu0 0
    %838 = vmatpush1.bf16.msra.mxu0 0
    %839 = vmatprep.mubr.bf16.mxu0 0
    %840 = vmatmul.mubr.bf16.gmra.mrb[0].mxu0 %v669
    %v841 = vpop.f32.mrb[0].mxu0
    %v842 = vadd.f32 0.0, %v841
    %v843 = vpop.f32.mrb[0].mxu0
    %v844 = vpop.f32.mrb[0].mxu0
    %v845 = vpop.f32.mrb[0].mxu0
    %846 = vdwg.mxu0
    %v848 = vrot.slane %v842, 4
    %849 = vrot.lane.b32.xlu0 %v848, 96
    %v850 = vpop.permute.xlu0 %849
    %v852 = vadd.f32 %v128, %v850
    %v853 = vxor.u32 %v714, 2147483648
    %v854 = vmul.f32 %v853, 1.442695
    %v855 = vpow.pop %v854
    %v856 = vadd.f32 %v855, 1.0
    %v857 = vrcp.pop %v856
    %v858 = vmul.f32 1.0, %v857
    %v859 = vxor.u32 %v760, 2147483648
    %v860 = vmul.f32 %v859, 1.442695
    %v861 = vpow.pop %v860
    %v862 = vadd.f32 %v861, 1.0
    %v863 = vrcp.pop %v862
    %v864 = vmul.f32 1.0, %v863
    %v865 = vtanh.pop %v806
    %v866 = vxor.u32 %v852, 2147483648
    %v867 = vmul.f32 %v866, 1.442695
    %v868 = vpow.pop %v867
    %v869 = vadd.f32 %v868, 1.0
    %v870 = vrcp.pop %v869
    %v871 = vmul.f32 1.0, %v870
    %v873 = vrot.slane %v650, 6
    %v875 = vmul.f32 %v864, %v873
    %877 = vrot.lane.b32.xlu0 %v865, 64
    %v878 = vpop.permute.xlu0 %877
    %v880 = vmul.f32 %v858, %v878
    %882 = vrot.lane.b32.xlu0 %v880, 32
    %v883 = vpop.permute.xlu0 %882
    %v885 = vadd.f32 %v875, %v883
    %v886 = vtanh.pop %v885
    %888 = vrot.lane.b32.xlu0 %v886, 64
    %v889 = vpop.permute.xlu0 %888
    %v891 = vmul.f32 %v871, %v889
    %893 = vrot.lane.b32.xlu0 %v891, 32
    %v894 = vpop.permute.xlu0 %893
    %vm896 = vcmask 259076
    %897 = vst.msk [vmem:[#allocation2] sm:$0x30] %vm896, %v894
    %v898 = vpack.c.bf16 %v891, %v891
    %v900 = vrot.slane %v898, 2
    %901 = vrot.lane.b32.xlu0 %v900, 32
    %v902 = vpop.permute.xlu0 %901
    %v904 = vsel %vm89, %v902, 0
    %906 = vmatprep.subr.bf16.mxu0 0
    %907 = vmatpush1.bf16.msra.mxu0 %v164
    %908 = vmatprep.subr.bf16.mxu0 0
    %909 = vmatpush1.bf16.msra.mxu0 %v165
    %910 = vmatprep.subr.bf16.mxu0 0
    %911 = vmatpush1.bf16.msra.mxu0 0
    %912 = vmatprep.subr.bf16.mxu0 0
    %913 = vmatpush1.bf16.msra.mxu0 0
    %914 = vmatprep.subr.bf16.mxu0 0
    %915 = vmatpush1.bf16.msra.mxu0 0
    %916 = vmatprep.subr.bf16.mxu0 0
    %917 = vmatpush1.bf16.msra.mxu0 0
    %918 = vmatprep.subr.bf16.mxu0 0
    %919 = vmatpush1.bf16.msra.mxu0 0
    %920 = vmatprep.subr.bf16.mxu0 0
    %921 = vmatpush1.bf16.msra.mxu0 0
    %922 = vmatprep.subr.bf16.mxu0 0
    %923 = vmatpush1.bf16.msra.mxu0 0
    %924 = vmatprep.subr.bf16.mxu0 0
    %925 = vmatpush1.bf16.msra.mxu0 0
    %926 = vmatprep.subr.bf16.mxu0 0
    %927 = vmatpush1.bf16.msra.mxu0 0
    %928 = vmatprep.subr.bf16.mxu0 0
    %929 = vmatpush1.bf16.msra.mxu0 0
    %930 = vmatprep.subr.bf16.mxu0 0
    %931 = vmatpush1.bf16.msra.mxu0 0
    %932 = vmatprep.subr.bf16.mxu0 0
    %933 = vmatpush1.bf16.msra.mxu0 0
    %934 = vmatprep.subr.bf16.mxu0 0
    %935 = vmatpush1.bf16.msra.mxu0 0
    %936 = vmatprep.subr.bf16.mxu0 0
    %937 = vmatpush1.bf16.msra.mxu0 0
    %938 = vmatprep.mubr.bf16.mxu0 0
    %939 = vmatmul.mubr.bf16.gmra.mrb[0].mxu0 %v904
    %v940 = vpop.f32.mrb[0].mxu0
    %v941 = vadd.f32 0.0, %v940
    %v942 = vpop.f32.mrb[0].mxu0
    %v943 = vpop.f32.mrb[0].mxu0
    %v944 = vpop.f32.mrb[0].mxu0
    %945 = vdwg.mxu0
    %v947 = vrot.slane %v941, 2
    %v949 = vadd.f32 %v128, %v947
    %950 = vmatprep.subr.bf16.mxu0 0
    %951 = vmatpush1.bf16.msra.mxu0 %v220
    %952 = vmatprep.subr.bf16.mxu0 0
    %953 = vmatpush1.bf16.msra.mxu0 %v221
    %954 = vmatprep.subr.bf16.mxu0 0
    %955 = vmatpush1.bf16.msra.mxu0 0
    %956 = vmatprep.subr.bf16.mxu0 0
    %957 = vmatpush1.bf16.msra.mxu0 0
    %958 = vmatprep.subr.bf16.mxu0 0
    %959 = vmatpush1.bf16.msra.mxu0 0
    %960 = vmatprep.subr.bf16.mxu0 0
    %961 = vmatpush1.bf16.msra.mxu0 0
    %962 = vmatprep.subr.bf16.mxu0 0
    %963 = vmatpush1.bf16.msra.mxu0 0
    %964 = vmatprep.subr.bf16.mxu0 0
    %965 = vmatpush1.bf16.msra.mxu0 0
    %966 = vmatprep.subr.bf16.mxu0 0
    %967 = vmatpush1.bf16.msra.mxu0 0
    %968 = vmatprep.subr.bf16.mxu0 0
    %969 = vmatpush1.bf16.msra.mxu0 0
    %970 = vmatprep.subr.bf16.mxu0 0
    %971 = vmatpush1.bf16.msra.mxu0 0
    %972 = vmatprep.subr.bf16.mxu0 0
    %973 = vmatpush1.bf16.msra.mxu0 0
    %974 = vmatprep.subr.bf16.mxu0 0
    %975 = vmatpush1.bf16.msra.mxu0 0
    %976 = vmatprep.subr.bf16.mxu0 0
    %977 = vmatpush1.bf16.msra.mxu0 0
    %978 = vmatprep.subr.bf16.mxu0 0
    %979 = vmatpush1.bf16.msra.mxu0 0
    %980 = vmatprep.subr.bf16.mxu0 0
    %981 = vmatpush1.bf16.msra.mxu0 0
    %982 = vmatprep.mubr.bf16.mxu0 0
    %983 = vmatmul.mubr.bf16.gmra.mrb[0].mxu0 %v904
    %v984 = vpop.f32.mrb[0].mxu0
    %v985 = vadd.f32 0.0, %v984
    %v986 = vpop.f32.mrb[0].mxu0
    %v987 = vpop.f32.mrb[0].mxu0
    %v988 = vpop.f32.mrb[0].mxu0
    %989 = vdwg.mxu0
    %v991 = vrot.slane %v985, 2
    %992 = vrot.lane.b32.xlu0 %v991, 32
    %v993 = vpop.permute.xlu0 %992
    %v995 = vadd.f32 %v128, %v993
    %996 = vmatprep.subr.bf16.mxu0 0
    %997 = vmatpush1.bf16.msra.mxu0 %v277
    %998 = vmatprep.subr.bf16.mxu0 0
    %999 = vmatpush1.bf16.msra.mxu0 %v278
    %1000 = vmatprep.subr.bf16.mxu0 0
    %1001 = vmatpush1.bf16.msra.mxu0 0
    %1002 = vmatprep.subr.bf16.mxu0 0
    %1003 = vmatpush1.bf16.msra.mxu0 0
    %1004 = vmatprep.subr.bf16.mxu0 0
    %1005 = vmatpush1.bf16.msra.mxu0 0
    %1006 = vmatprep.subr.bf16.mxu0 0
    %1007 = vmatpush1.bf16.msra.mxu0 0
    %1008 = vmatprep.subr.bf16.mxu0 0
    %1009 = vmatpush1.bf16.msra.mxu0 0
    %1010 = vmatprep.subr.bf16.mxu0 0
    %1011 = vmatpush1.bf16.msra.mxu0 0
    %1012 = vmatprep.subr.bf16.mxu0 0
    %1013 = vmatpush1.bf16.msra.mxu0 0
    %1014 = vmatprep.subr.bf16.mxu0 0
    %1015 = vmatpush1.bf16.msra.mxu0 0
    %1016 = vmatprep.subr.bf16.mxu0 0
    %1017 = vmatpush1.bf16.msra.mxu0 0
    %1018 = vmatprep.subr.bf16.mxu0 0
    %1019 = vmatpush1.bf16.msra.mxu0 0
    %1020 = vmatprep.subr.bf16.mxu0 0
    %1021 = vmatpush1.bf16.msra.mxu0 0
    %1022 = vmatprep.subr.bf16.mxu0 0
    %1023 = vmatpush1.bf16.msra.mxu0 0
    %1024 = vmatprep.subr.bf16.mxu0 0
    %1025 = vmatpush1.bf16.msra.mxu0 0
    %1026 = vmatprep.subr.bf16.mxu0 0
    %1027 = vmatpush1.bf16.msra.mxu0 0
    %1028 = vmatprep.mubr.bf16.mxu0 0
    %1029 = vmatmul.mubr.bf16.gmra.mrb[0].mxu0 %v904
    %v1030 = vpop.f32.mrb[0].mxu0
    %v1031 = vadd.f32 0.0, %v1030
    %v1032 = vpop.f32.mrb[0].mxu0
    %v1033 = vpop.f32.mrb[0].mxu0
    %v1034 = vpop.f32.mrb[0].mxu0
    %1035 = vdwg.mxu0
    %v1037 = vrot.slane %v1031, 2
    %1038 = vrot.lane.b32.xlu0 %v1037, 64
    %v1039 = vpop.permute.xlu0 %1038
    %v1041 = vadd.f32 %v128, %v1039
    %1042 = vmatprep.subr.bf16.mxu0 0
    %1043 = vmatpush1.bf16.msra.mxu0 %v334
    %1044 = vmatprep.subr.bf16.mxu0 0
    %1045 = vmatpush1.bf16.msra.mxu0 %v335
    %1046 = vmatprep.subr.bf16.mxu0 0
    %1047 = vmatpush1.bf16.msra.mxu0 0
    %1048 = vmatprep.subr.bf16.mxu0 0
    %1049 = vmatpush1.bf16.msra.mxu0 0
    %1050 = vmatprep.subr.bf16.mxu0 0
    %1051 = vmatpush1.bf16.msra.mxu0 0
    %1052 = vmatprep.subr.bf16.mxu0 0
    %1053 = vmatpush1.bf16.msra.mxu0 0
    %1054 = vmatprep.subr.bf16.mxu0 0
    %1055 = vmatpush1.bf16.msra.mxu0 0
    %1056 = vmatprep.subr.bf16.mxu0 0
    %1057 = vmatpush1.bf16.msra.mxu0 0
    %1058 = vmatprep.subr.bf16.mxu0 0
    %1059 = vmatpush1.bf16.msra.mxu0 0
    %1060 = vmatprep.subr.bf16.mxu0 0
    %1061 = vmatpush1.bf16.msra.mxu0 0
    %1062 = vmatprep.subr.bf16.mxu0 0
    %1063 = vmatpush1.bf16.msra.mxu0 0
    %1064 = vmatprep.subr.bf16.mxu0 0
    %1065 = vmatpush1.bf16.msra.mxu0 0
    %1066 = vmatprep.subr.bf16.mxu0 0
    %1067 = vmatpush1.bf16.msra.mxu0 0
    %1068 = vmatprep.subr.bf16.mxu0 0
    %1069 = vmatpush1.bf16.msra.mxu0 0
    %1070 = vmatprep.subr.bf16.mxu0 0
    %1071 = vmatpush1.bf16.msra.mxu0 0
    %1072 = vmatprep.subr.bf16.mxu0 0
    %1073 = vmatpush1.bf16.msra.mxu0 0
    %1074 = vmatprep.mubr.bf16.mxu0 0
    %1075 = vmatmul.mubr.bf16.gmra.mrb[0].mxu0 %v904
    %v1076 = vpop.f32.mrb[0].mxu0
    %v1077 = vadd.f32 0.0, %v1076
    %v1078 = vpop.f32.mrb[0].mxu0
    %v1079 = vpop.f32.mrb[0].mxu0
    %v1080 = vpop.f32.mrb[0].mxu0
    %1081 = vdwg.mxu0
    %v1083 = vrot.slane %v1077, 2
    %1084 = vrot.lane.b32.xlu0 %v1083, 96
    %v1085 = vpop.permute.xlu0 %1084
    %v1087 = vadd.f32 %v128, %v1085
    %v1088 = vxor.u32 %v949, 2147483648
    %v1089 = vmul.f32 %v1088, 1.442695
    %v1090 = vpow.pop %v1089
    %v1091 = vadd.f32 %v1090, 1.0
    %v1092 = vrcp.pop %v1091
    %v1093 = vmul.f32 1.0, %v1092
    %v1094 = vxor.u32 %v995, 2147483648
    %v1095 = vmul.f32 %v1094, 1.442695
    %v1096 = vpow.pop %v1095
    %v1097 = vadd.f32 %v1096, 1.0
    %v1098 = vrcp.pop %v1097
    %v1099 = vmul.f32 1.0, %v1098
    %v1100 = vtanh.pop %v1041
    %v1101 = vxor.u32 %v1087, 2147483648
    %v1102 = vmul.f32 %v1101, 1.442695
    %v1103 = vpow.pop %v1102
    %v1104 = vadd.f32 %v1103, 1.0
    %v1105 = vrcp.pop %v1104
    %v1106 = vmul.f32 1.0, %v1105
    %v1108 = vrot.slane %v885, 6
    %v1110 = vmul.f32 %v1099, %v1108
    %1112 = vrot.lane.b32.xlu0 %v1100, 64
    %v1113 = vpop.permute.xlu0 %1112
    %v1115 = vmul.f32 %v1093, %v1113
    %1117 = vrot.lane.b32.xlu0 %v1115, 32
    %v1118 = vpop.permute.xlu0 %1117
    %v1120 = vadd.f32 %v1110, %v1118
    %v1121 = vtanh.pop %v1120
    %1123 = vrot.lane.b32.xlu0 %v1121, 64
    %v1124 = vpop.permute.xlu0 %1123
    %v1126 = vmul.f32 %v1106, %v1124
    %1128 = vrot.lane.b32.xlu0 %v1126, 32
    %v1129 = vpop.permute.xlu0 %1128
    %vm1131 = vcmask 261126
    %1132 = vst.msk [vmem:[#allocation2] sm:$0xc0] %vm1131, %v1129
    %v1133 = vpack.c.bf16 %v1126, %v1126
    %v1135 = vrot.slane %v1133, 3
    %1136 = vrot.lane.b32.xlu0 %v1135, 32
    %v1137 = vpop.permute.xlu0 %1136
    %v1139 = vsel %vm89, %v1137, 0
    %1141 = vmatprep.subr.bf16.mxu0 0
    %1142 = vmatpush1.bf16.msra.mxu0 %v164
    %1143 = vmatprep.subr.bf16.mxu0 0
    %1144 = vmatpush1.bf16.msra.mxu0 %v165
    %1145 = vmatprep.subr.bf16.mxu0 0
    %1146 = vmatpush1.bf16.msra.mxu0 0
    %1147 = vmatprep.subr.bf16.mxu0 0
    %1148 = vmatpush1.bf16.msra.mxu0 0
    %1149 = vmatprep.subr.bf16.mxu0 0
    %1150 = vmatpush1.bf16.msra.mxu0 0
    %1151 = vmatprep.subr.bf16.mxu0 0
    %1152 = vmatpush1.bf16.msra.mxu0 0
    %1153 = vmatprep.subr.bf16.mxu0 0
    %1154 = vmatpush1.bf16.msra.mxu0 0
    %1155 = vmatprep.subr.bf16.mxu0 0
    %1156 = vmatpush1.bf16.msra.mxu0 0
    %1157 = vmatprep.subr.bf16.mxu0 0
    %1158 = vmatpush1.bf16.msra.mxu0 0
    %1159 = vmatprep.subr.bf16.mxu0 0
    %1160 = vmatpush1.bf16.msra.mxu0 0
    %1161 = vmatprep.subr.bf16.mxu0 0
    %1162 = vmatpush1.bf16.msra.mxu0 0
    %1163 = vmatprep.subr.bf16.mxu0 0
    %1164 = vmatpush1.bf16.msra.mxu0 0
    %1165 = vmatprep.subr.bf16.mxu0 0
    %1166 = vmatpush1.bf16.msra.mxu0 0
    %1167 = vmatprep.subr.bf16.mxu0 0
    %1168 = vmatpush1.bf16.msra.mxu0 0
    %1169 = vmatprep.subr.bf16.mxu0 0
    %1170 = vmatpush1.bf16.msra.mxu0 0
    %1171 = vmatprep.subr.bf16.mxu0 0
    %1172 = vmatpush1.bf16.msra.mxu0 0
    %1173 = vmatprep.mubr.bf16.mxu0 0
    %1174 = vmatmul.mubr.bf16.gmra.mrb[0].mxu0 %v1139
    %v1175 = vpop.f32.mrb[0].mxu0
    %v1176 = vadd.f32 0.0, %v1175
    %v1177 = vpop.f32.mrb[0].mxu0
    %v1178 = vpop.f32.mrb[0].mxu0
    %v1179 = vpop.f32.mrb[0].mxu0
    %1180 = vdwg.mxu0
    %v1181 = vadd.f32 %v131, %v1176
    %1182 = vmatprep.subr.bf16.mxu0 0
    %1183 = vmatpush1.bf16.msra.mxu0 %v220
    %1184 = vmatprep.subr.bf16.mxu0 0
    %1185 = vmatpush1.bf16.msra.mxu0 %v221
    %1186 = vmatprep.subr.bf16.mxu0 0
    %1187 = vmatpush1.bf16.msra.mxu0 0
    %1188 = vmatprep.subr.bf16.mxu0 0
    %1189 = vmatpush1.bf16.msra.mxu0 0
    %1190 = vmatprep.subr.bf16.mxu0 0
    %1191 = vmatpush1.bf16.msra.mxu0 0
    %1192 = vmatprep.subr.bf16.mxu0 0
    %1193 = vmatpush1.bf16.msra.mxu0 0
    %1194 = vmatprep.subr.bf16.mxu0 0
    %1195 = vmatpush1.bf16.msra.mxu0 0
    %1196 = vmatprep.subr.bf16.mxu0 0
    %1197 = vmatpush1.bf16.msra.mxu0 0
    %1198 = vmatprep.subr.bf16.mxu0 0
    %1199 = vmatpush1.bf16.msra.mxu0 0
    %1200 = vmatprep.subr.bf16.mxu0 0
    %1201 = vmatpush1.bf16.msra.mxu0 0
    %1202 = vmatprep.subr.bf16.mxu0 0
    %1203 = vmatpush1.bf16.msra.mxu0 0
    %1204 = vmatprep.subr.bf16.mxu0 0
    %1205 = vmatpush1.bf16.msra.mxu0 0
    %1206 = vmatprep.subr.bf16.mxu0 0
    %1207 = vmatpush1.bf16.msra.mxu0 0
    %1208 = vmatprep.subr.bf16.mxu0 0
    %1209 = vmatpush1.bf16.msra.mxu0 0
    %1210 = vmatprep.subr.bf16.mxu0 0
    %1211 = vmatpush1.bf16.msra.mxu0 0
    %1212 = vmatprep.subr.bf16.mxu0 0
    %1213 = vmatpush1.bf16.msra.mxu0 0
    %1214 = vmatprep.mubr.bf16.mxu0 0
    %1215 = vmatmul.mubr.bf16.gmra.mrb[0].mxu0 %v1139
    %v1216 = vpop.f32.mrb[0].mxu0
    %v1217 = vadd.f32 0.0, %v1216
    %v1218 = vpop.f32.mrb[0].mxu0
    %v1219 = vpop.f32.mrb[0].mxu0
    %v1220 = vpop.f32.mrb[0].mxu0
    %1221 = vdwg.mxu0
    %1223 = vrot.lane.b32.xlu0 %v1217, 32
    %v1224 = vpop.permute.xlu0 %1223
    %v1226 = vadd.f32 %v131, %v1224
    %1227 = vmatprep.subr.bf16.mxu0 0
    %1228 = vmatpush1.bf16.msra.mxu0 %v277
    %1229 = vmatprep.subr.bf16.mxu0 0
    %1230 = vmatpush1.bf16.msra.mxu0 %v278
    %1231 = vmatprep.subr.bf16.mxu0 0
    %1232 = vmatpush1.bf16.msra.mxu0 0
    %1233 = vmatprep.subr.bf16.mxu0 0
    %1234 = vmatpush1.bf16.msra.mxu0 0
    %1235 = vmatprep.subr.bf16.mxu0 0
    %1236 = vmatpush1.bf16.msra.mxu0 0
    %1237 = vmatprep.subr.bf16.mxu0 0
    %1238 = vmatpush1.bf16.msra.mxu0 0
    %1239 = vmatprep.subr.bf16.mxu0 0
    %1240 = vmatpush1.bf16.msra.mxu0 0
    %1241 = vmatprep.subr.bf16.mxu0 0
    %1242 = vmatpush1.bf16.msra.mxu0 0
    %1243 = vmatprep.subr.bf16.mxu0 0
    %1244 = vmatpush1.bf16.msra.mxu0 0
    %1245 = vmatprep.subr.bf16.mxu0 0
    %1246 = vmatpush1.bf16.msra.mxu0 0
    %1247 = vmatprep.subr.bf16.mxu0 0
    %1248 = vmatpush1.bf16.msra.mxu0 0
    %1249 = vmatprep.subr.bf16.mxu0 0
    %1250 = vmatpush1.bf16.msra.mxu0 0
    %1251 = vmatprep.subr.bf16.mxu0 0
    %1252 = vmatpush1.bf16.msra.mxu0 0
    %1253 = vmatprep.subr.bf16.mxu0 0
    %1254 = vmatpush1.bf16.msra.mxu0 0
    %1255 = vmatprep.subr.bf16.mxu0 0
    %1256 = vmatpush1.bf16.msra.mxu0 0
    %1257 = vmatprep.subr.bf16.mxu0 0
    %1258 = vmatpush1.bf16.msra.mxu0 0
    %1259 = vmatprep.mubr.bf16.mxu0 0
    %1260 = vmatmul.mubr.bf16.gmra.mrb[0].mxu0 %v1139
    %v1261 = vpop.f32.mrb[0].mxu0
    %v1262 = vadd.f32 0.0, %v1261
    %v1263 = vpop.f32.mrb[0].mxu0
    %v1264 = vpop.f32.mrb[0].mxu0
    %v1265 = vpop.f32.mrb[0].mxu0
    %1266 = vdwg.mxu0
    %1268 = vrot.lane.b32.xlu0 %v1262, 64
    %v1269 = vpop.permute.xlu0 %1268
    %v1271 = vadd.f32 %v131, %v1269
    %1272 = vmatprep.subr.bf16.mxu0 0
    %1273 = vmatpush1.bf16.msra.mxu0 %v334
    %1274 = vmatprep.subr.bf16.mxu0 0
    %1275 = vmatpush1.bf16.msra.mxu0 %v335
    %1276 = vmatprep.subr.bf16.mxu0 0
    %1277 = vmatpush1.bf16.msra.mxu0 0
    %1278 = vmatprep.subr.bf16.mxu0 0
    %1279 = vmatpush1.bf16.msra.mxu0 0
    %1280 = vmatprep.subr.bf16.mxu0 0
    %1281 = vmatpush1.bf16.msra.mxu0 0
    %1282 = vmatprep.subr.bf16.mxu0 0
    %1283 = vmatpush1.bf16.msra.mxu0 0
    %1284 = vmatprep.subr.bf16.mxu0 0
    %1285 = vmatpush1.bf16.msra.mxu0 0
    %1286 = vmatprep.subr.bf16.mxu0 0
    %1287 = vmatpush1.bf16.msra.mxu0 0
    %1288 = vmatprep.subr.bf16.mxu0 0
    %1289 = vmatpush1.bf16.msra.mxu0 0
    %1290 = vmatprep.subr.bf16.mxu0 0
    %1291 = vmatpush1.bf16.msra.mxu0 0
    %1292 = vmatprep.subr.bf16.mxu0 0
    %1293 = vmatpush1.bf16.msra.mxu0 0
    %1294 = vmatprep.subr.bf16.mxu0 0
    %1295 = vmatpush1.bf16.msra.mxu0 0
    %1296 = vmatprep.subr.bf16.mxu0 0
    %1297 = vmatpush1.bf16.msra.mxu0 0
    %1298 = vmatprep.subr.bf16.mxu0 0
    %1299 = vmatpush1.bf16.msra.mxu0 0
    %1300 = vmatprep.subr.bf16.mxu0 0
    %1301 = vmatpush1.bf16.msra.mxu0 0
    %1302 = vmatprep.subr.bf16.mxu0 0
    %1303 = vmatpush1.bf16.msra.mxu0 0
    %1304 = vmatprep.mubr.bf16.mxu0 0
    %1305 = vmatmul.mubr.bf16.gmra.mrb[0].mxu0 %v1139
    %v1306 = vpop.f32.mrb[0].mxu0
    %v1307 = vadd.f32 0.0, %v1306
    %v1308 = vpop.f32.mrb[0].mxu0
    %v1309 = vpop.f32.mrb[0].mxu0
    %v1310 = vpop.f32.mrb[0].mxu0
    %1311 = vdwg.mxu0
    %1313 = vrot.lane.b32.xlu0 %v1307, 96
    %v1314 = vpop.permute.xlu0 %1313
    %v1316 = vadd.f32 %v131, %v1314
    %v1317 = vxor.u32 %v1181, 2147483648
    %v1318 = vmul.f32 %v1317, 1.442695
    %v1319 = vpow.pop %v1318
    %v1320 = vadd.f32 %v1319, 1.0
    %v1321 = vrcp.pop %v1320
    %v1322 = vmul.f32 1.0, %v1321
    %v1323 = vxor.u32 %v1226, 2147483648
    %v1324 = vmul.f32 %v1323, 1.442695
    %v1325 = vpow.pop %v1324
    %v1326 = vadd.f32 %v1325, 1.0
    %v1327 = vrcp.pop %v1326
    %v1328 = vmul.f32 1.0, %v1327
    %v1329 = vtanh.pop %v1271
    %v1330 = vxor.u32 %v1316, 2147483648
    %v1331 = vmul.f32 %v1330, 1.442695
    %v1332 = vpow.pop %v1331
    %v1333 = vadd.f32 %v1332, 1.0
    %v1334 = vrcp.pop %v1333
    %v1335 = vmul.f32 1.0, %v1334
    %v1337 = vrot.slane %v1120, 6
    %v1339 = vmul.f32 %v1328, %v1337
    %1341 = vrot.lane.b32.xlu0 %v1329, 64
    %v1342 = vpop.permute.xlu0 %1341
    %v1344 = vmul.f32 %v1322, %v1342
    %1346 = vrot.lane.b32.xlu0 %v1344, 32
    %v1347 = vpop.permute.xlu0 %1346
    %v1349 = vadd.f32 %v1339, %v1347
    %v1350 = vtanh.pop %v1349
    %1352 = vrot.lane.b32.xlu0 %v1350, 64
    %v1353 = vpop.permute.xlu0 %1352
    %v1355 = vmul.f32 %v1335, %v1353
    %1357 = vrot.lane.b32.xlu0 %v1355, 32
    %v1358 = vpop.permute.xlu0 %1357
    %1360 = vst.msk [vmem:[#allocation2 + $0x8] sm:$0x3] %vm427, %v1358
    %v1361 = vpack.c.bf16 %v1355, %v1355
    %1363 = vrot.lane.b32.xlu0 %v1361, 32
    %v1364 = vpop.permute.xlu0 %1363
    %v1366 = vsel %vm89, %v1364, 0
    %1368 = vmatprep.subr.bf16.mxu0 0
    %1369 = vmatpush1.bf16.msra.mxu0 %v164
    %1370 = vmatprep.subr.bf16.mxu0 0
    %1371 = vmatpush1.bf16.msra.mxu0 %v165
    %1372 = vmatprep.subr.bf16.mxu0 0
    %1373 = vmatpush1.bf16.msra.mxu0 0
    %1374 = vmatprep.subr.bf16.mxu0 0
    %1375 = vmatpush1.bf16.msra.mxu0 0
    %1376 = vmatprep.subr.bf16.mxu0 0
    %1377 = vmatpush1.bf16.msra.mxu0 0
    %1378 = vmatprep.subr.bf16.mxu0 0
    %1379 = vmatpush1.bf16.msra.mxu0 0
    %1380 = vmatprep.subr.bf16.mxu0 0
    %1381 = vmatpush1.bf16.msra.mxu0 0
    %1382 = vmatprep.subr.bf16.mxu0 0
    %1383 = vmatpush1.bf16.msra.mxu0 0
    %1384 = vmatprep.subr.bf16.mxu0 0
    %1385 = vmatpush1.bf16.msra.mxu0 0
    %1386 = vmatprep.subr.bf16.mxu0 0
    %1387 = vmatpush1.bf16.msra.mxu0 0
    %1388 = vmatprep.subr.bf16.mxu0 0
    %1389 = vmatpush1.bf16.msra.mxu0 0
    %1390 = vmatprep.subr.bf16.mxu0 0
    %1391 = vmatpush1.bf16.msra.mxu0 0
    %1392 = vmatprep.subr.bf16.mxu0 0
    %1393 = vmatpush1.bf16.msra.mxu0 0
    %1394 = vmatprep.subr.bf16.mxu0 0
    %1395 = vmatpush1.bf16.msra.mxu0 0
    %1396 = vmatprep.subr.bf16.mxu0 0
    %1397 = vmatpush1.bf16.msra.mxu0 0
    %1398 = vmatprep.subr.bf16.mxu0 0
    %1399 = vmatpush1.bf16.msra.mxu0 0
    %1400 = vmatprep.mubr.bf16.mxu0 0
    %1401 = vmatmul.mubr.bf16.gmra.mrb[0].mxu0 %v1366
    %v1402 = vpop.f32.mrb[0].mxu0
    %v1403 = vadd.f32 0.0, %v1402
    %v1404 = vpop.f32.mrb[0].mxu0
    %v1405 = vpop.f32.mrb[0].mxu0
    %v1406 = vpop.f32.mrb[0].mxu0
    %1407 = vdwg.mxu0
    %v1409 = vrot.slane %v1403, 6
    %v1411 = vadd.f32 %v131, %v1409
    %1412 = vmatprep.subr.bf16.mxu0 0
    %1413 = vmatpush1.bf16.msra.mxu0 %v220
    %1414 = vmatprep.subr.bf16.mxu0 0
    %1415 = vmatpush1.bf16.msra.mxu0 %v221
    %1416 = vmatprep.subr.bf16.mxu0 0
    %1417 = vmatpush1.bf16.msra.mxu0 0
    %1418 = vmatprep.subr.bf16.mxu0 0
    %1419 = vmatpush1.bf16.msra.mxu0 0
    %1420 = vmatprep.subr.bf16.mxu0 0
    %1421 = vmatpush1.bf16.msra.mxu0 0
    %1422 = vmatprep.subr.bf16.mxu0 0
    %1423 = vmatpush1.bf16.msra.mxu0 0
    %1424 = vmatprep.subr.bf16.mxu0 0
    %1425 = vmatpush1.bf16.msra.mxu0 0
    %1426 = vmatprep.subr.bf16.mxu0 0
    %1427 = vmatpush1.bf16.msra.mxu0 0
    %1428 = vmatprep.subr.bf16.mxu0 0
    %1429 = vmatpush1.bf16.msra.mxu0 0
    %1430 = vmatprep.subr.bf16.mxu0 0
    %1431 = vmatpush1.bf16.msra.mxu0 0
    %1432 = vmatprep.subr.bf16.mxu0 0
    %1433 = vmatpush1.bf16.msra.mxu0 0
    %1434 = vmatprep.subr.bf16.mxu0 0
    %1435 = vmatpush1.bf16.msra.mxu0 0
    %1436 = vmatprep.subr.bf16.mxu0 0
    %1437 = vmatpush1.bf16.msra.mxu0 0
    %1438 = vmatprep.subr.bf16.mxu0 0
    %1439 = vmatpush1.bf16.msra.mxu0 0
    %1440 = vmatprep.subr.bf16.mxu0 0
    %1441 = vmatpush1.bf16.msra.mxu0 0
    %1442 = vmatprep.subr.bf16.mxu0 0
    %1443 = vmatpush1.bf16.msra.mxu0 0
    %1444 = vmatprep.mubr.bf16.mxu0 0
    %1445 = vmatmul.mubr.bf16.gmra.mrb[0].mxu0 %v1366
    %v1446 = vpop.f32.mrb[0].mxu0
    %v1447 = vadd.f32 0.0, %v1446
    %v1448 = vpop.f32.mrb[0].mxu0
    %v1449 = vpop.f32.mrb[0].mxu0
    %v1450 = vpop.f32.mrb[0].mxu0
    %1451 = vdwg.mxu0
    %v1453 = vrot.slane %v1447, 6
    %1454 = vrot.lane.b32.xlu0 %v1453, 32
    %v1455 = vpop.permute.xlu0 %1454
    %v1457 = vadd.f32 %v131, %v1455
    %1458 = vmatprep.subr.bf16.mxu0 0
    %1459 = vmatpush1.bf16.msra.mxu0 %v277
    %1460 = vmatprep.subr.bf16.mxu0 0
    %1461 = vmatpush1.bf16.msra.mxu0 %v278
    %1462 = vmatprep.subr.bf16.mxu0 0
    %1463 = vmatpush1.bf16.msra.mxu0 0
    %1464 = vmatprep.subr.bf16.mxu0 0
    %1465 = vmatpush1.bf16.msra.mxu0 0
    %1466 = vmatprep.subr.bf16.mxu0 0
    %1467 = vmatpush1.bf16.msra.mxu0 0
    %1468 = vmatprep.subr.bf16.mxu0 0
    %1469 = vmatpush1.bf16.msra.mxu0 0
    %1470 = vmatprep.subr.bf16.mxu0 0
    %1471 = vmatpush1.bf16.msra.mxu0 0
    %1472 = vmatprep.subr.bf16.mxu0 0
    %1473 = vmatpush1.bf16.msra.mxu0 0
    %1474 = vmatprep.subr.bf16.mxu0 0
    %1475 = vmatpush1.bf16.msra.mxu0 0
    %1476 = vmatprep.subr.bf16.mxu0 0
    %1477 = vmatpush1.bf16.msra.mxu0 0
    %1478 = vmatprep.subr.bf16.mxu0 0
    %1479 = vmatpush1.bf16.msra.mxu0 0
    %1480 = vmatprep.subr.bf16.mxu0 0
    %1481 = vmatpush1.bf16.msra.mxu0 0
    %1482 = vmatprep.subr.bf16.mxu0 0
    %1483 = vmatpush1.bf16.msra.mxu0 0
    %1484 = vmatprep.subr.bf16.mxu0 0
    %1485 = vmatpush1.bf16.msra.mxu0 0
    %1486 = vmatprep.subr.bf16.mxu0 0
    %1487 = vmatpush1.bf16.msra.mxu0 0
    %1488 = vmatprep.subr.bf16.mxu0 0
    %1489 = vmatpush1.bf16.msra.mxu0 0
    %1490 = vmatprep.mubr.bf16.mxu0 0
    %1491 = vmatmul.mubr.bf16.gmra.mrb[0].mxu0 %v1366
    %v1492 = vpop.f32.mrb[0].mxu0
    %v1493 = vadd.f32 0.0, %v1492
    %v1494 = vpop.f32.mrb[0].mxu0
    %v1495 = vpop.f32.mrb[0].mxu0
    %v1496 = vpop.f32.mrb[0].mxu0
    %1497 = vdwg.mxu0
    %v1499 = vrot.slane %v1493, 6
    %1500 = vrot.lane.b32.xlu0 %v1499, 64
    %v1501 = vpop.permute.xlu0 %1500
    %v1503 = vadd.f32 %v131, %v1501
    %1504 = vmatprep.subr.bf16.mxu0 0
    %1505 = vmatpush1.bf16.msra.mxu0 %v334
    %1506 = vmatprep.subr.bf16.mxu0 0
    %1507 = vmatpush1.bf16.msra.mxu0 %v335
    %1508 = vmatprep.subr.bf16.mxu0 0
    %1509 = vmatpush1.bf16.msra.mxu0 0
    %1510 = vmatprep.subr.bf16.mxu0 0
    %1511 = vmatpush1.bf16.msra.mxu0 0
    %1512 = vmatprep.subr.bf16.mxu0 0
    %1513 = vmatpush1.bf16.msra.mxu0 0
    %1514 = vmatprep.subr.bf16.mxu0 0
    %1515 = vmatpush1.bf16.msra.mxu0 0
    %1516 = vmatprep.subr.bf16.mxu0 0
    %1517 = vmatpush1.bf16.msra.mxu0 0
    %1518 = vmatprep.subr.bf16.mxu0 0
    %1519 = vmatpush1.bf16.msra.mxu0 0
    %1520 = vmatprep.subr.bf16.mxu0 0
    %1521 = vmatpush1.bf16.msra.mxu0 0
    %1522 = vmatprep.subr.bf16.mxu0 0
    %1523 = vmatpush1.bf16.msra.mxu0 0
    %1524 = vmatprep.subr.bf16.mxu0 0
    %1525 = vmatpush1.bf16.msra.mxu0 0
    %1526 = vmatprep.subr.bf16.mxu0 0
    %1527 = vmatpush1.bf16.msra.mxu0 0
    %1528 = vmatprep.subr.bf16.mxu0 0
    %1529 = vmatpush1.bf16.msra.mxu0 0
    %1530 = vmatprep.subr.bf16.mxu0 0
    %1531 = vmatpush1.bf16.msra.mxu0 0
    %1532 = vmatprep.subr.bf16.mxu0 0
    %1533 = vmatpush1.bf16.msra.mxu0 0
    %1534 = vmatprep.subr.bf16.mxu0 0
    %1535 = vmatpush1.bf16.msra.mxu0 0
    %1536 = vmatprep.mubr.bf16.mxu0 0
    %1537 = vmatmul.mubr.bf16.gmra.mrb[0].mxu0 %v1366
    %v1538 = vpop.f32.mrb[0].mxu0
    %v1539 = vadd.f32 0.0, %v1538
    %v1540 = vpop.f32.mrb[0].mxu0
    %v1541 = vpop.f32.mrb[0].mxu0
    %v1542 = vpop.f32.mrb[0].mxu0
    %1543 = vdwg.mxu0
    %v1545 = vrot.slane %v1539, 6
    %1546 = vrot.lane.b32.xlu0 %v1545, 96
    %v1547 = vpop.permute.xlu0 %1546
    %v1549 = vadd.f32 %v131, %v1547
    %v1550 = vxor.u32 %v1411, 2147483648
    %v1551 = vmul.f32 %v1550, 1.442695
    %v1552 = vpow.pop %v1551
    %v1553 = vadd.f32 %v1552, 1.0
    %v1554 = vrcp.pop %v1553
    %v1555 = vmul.f32 1.0, %v1554
    %v1556 = vxor.u32 %v1457, 2147483648
    %v1557 = vmul.f32 %v1556, 1.442695
    %v1558 = vpow.pop %v1557
    %v1559 = vadd.f32 %v1558, 1.0
    %v1560 = vrcp.pop %v1559
    %v1561 = vmul.f32 1.0, %v1560
    %v1562 = vtanh.pop %v1503
    %v1563 = vxor.u32 %v1549, 2147483648
    %v1564 = vmul.f32 %v1563, 1.442695
    %v1565 = vpow.pop %v1564
    %v1566 = vadd.f32 %v1565, 1.0
    %v1567 = vrcp.pop %v1566
    %v1568 = vmul.f32 1.0, %v1567
    %v1570 = vrot.slane %v1349, 6
    %v1572 = vmul.f32 %v1561, %v1570
    %1574 = vrot.lane.b32.xlu0 %v1562, 64
    %v1575 = vpop.permute.xlu0 %1574
    %v1577 = vmul.f32 %v1555, %v1575
    %1579 = vrot.lane.b32.xlu0 %v1577, 32
    %v1580 = vpop.permute.xlu0 %1579
    %v1582 = vadd.f32 %v1572, %v1580
    %v1583 = vtanh.pop %v1582
    %1585 = vrot.lane.b32.xlu0 %v1583, 64
    %v1586 = vpop.permute.xlu0 %1585
    %v1588 = vmul.f32 %v1568, %v1586
    %1590 = vrot.lane.b32.xlu0 %v1588, 32
    %v1591 = vpop.permute.xlu0 %1590
    %1593 = vst.msk [vmem:[#allocation2 + $0x8] sm:$0xc] %vm661, %v1591
    %v1594 = vpack.c.bf16 %v1588, %v1588
    %v1596 = vrot.slane %v1594, 1
    %1597 = vrot.lane.b32.xlu0 %v1596, 32
    %v1598 = vpop.permute.xlu0 %1597
    %v1600 = vsel %vm89, %v1598, 0
    %1602 = vmatprep.subr.bf16.mxu0 0
    %1603 = vmatpush1.bf16.msra.mxu0 %v164
    %1604 = vmatprep.subr.bf16.mxu0 0
    %1605 = vmatpush1.bf16.msra.mxu0 %v165
    %1606 = vmatprep.subr.bf16.mxu0 0
    %1607 = vmatpush1.bf16.msra.mxu0 0
    %1608 = vmatprep.subr.bf16.mxu0 0
    %1609 = vmatpush1.bf16.msra.mxu0 0
    %1610 = vmatprep.subr.bf16.mxu0 0
    %1611 = vmatpush1.bf16.msra.mxu0 0
    %1612 = vmatprep.subr.bf16.mxu0 0
    %1613 = vmatpush1.bf16.msra.mxu0 0
    %1614 = vmatprep.subr.bf16.mxu0 0
    %1615 = vmatpush1.bf16.msra.mxu0 0
    %1616 = vmatprep.subr.bf16.mxu0 0
    %1617 = vmatpush1.bf16.msra.mxu0 0
    %1618 = vmatprep.subr.bf16.mxu0 0
    %1619 = vmatpush1.bf16.msra.mxu0 0
    %1620 = vmatprep.subr.bf16.mxu0 0
    %1621 = vmatpush1.bf16.msra.mxu0 0
    %1622 = vmatprep.subr.bf16.mxu0 0
    %1623 = vmatpush1.bf16.msra.mxu0 0
    %1624 = vmatprep.subr.bf16.mxu0 0
    %1625 = vmatpush1.bf16.msra.mxu0 0
    %1626 = vmatprep.subr.bf16.mxu0 0
    %1627 = vmatpush1.bf16.msra.mxu0 0
    %1628 = vmatprep.subr.bf16.mxu0 0
    %1629 = vmatpush1.bf16.msra.mxu0 0
    %1630 = vmatprep.subr.bf16.mxu0 0
    %1631 = vmatpush1.bf16.msra.mxu0 0
    %1632 = vmatprep.subr.bf16.mxu0 0
    %1633 = vmatpush1.bf16.msra.mxu0 0
    %1634 = vmatprep.mubr.bf16.mxu0 0
    %1635 = vmatmul.mubr.bf16.gmra.mrb[0].mxu0 %v1600
    %v1636 = vpop.f32.mrb[0].mxu0
    %v1637 = vadd.f32 0.0, %v1636
    %v1638 = vpop.f32.mrb[0].mxu0
    %v1639 = vpop.f32.mrb[0].mxu0
    %v1640 = vpop.f32.mrb[0].mxu0
    %1641 = vdwg.mxu0
    %v1643 = vrot.slane %v1637, 4
    %v1645 = vadd.f32 %v131, %v1643
    %1646 = vmatprep.subr.bf16.mxu0 0
    %1647 = vmatpush1.bf16.msra.mxu0 %v220
    %1648 = vmatprep.subr.bf16.mxu0 0
    %1649 = vmatpush1.bf16.msra.mxu0 %v221
    %1650 = vmatprep.subr.bf16.mxu0 0
    %1651 = vmatpush1.bf16.msra.mxu0 0
    %1652 = vmatprep.subr.bf16.mxu0 0
    %1653 = vmatpush1.bf16.msra.mxu0 0
    %1654 = vmatprep.subr.bf16.mxu0 0
    %1655 = vmatpush1.bf16.msra.mxu0 0
    %1656 = vmatprep.subr.bf16.mxu0 0
    %1657 = vmatpush1.bf16.msra.mxu0 0
    %1658 = vmatprep.subr.bf16.mxu0 0
    %1659 = vmatpush1.bf16.msra.mxu0 0
    %1660 = vmatprep.subr.bf16.mxu0 0
    %1661 = vmatpush1.bf16.msra.mxu0 0
    %1662 = vmatprep.subr.bf16.mxu0 0
    %1663 = vmatpush1.bf16.msra.mxu0 0
    %1664 = vmatprep.subr.bf16.mxu0 0
    %1665 = vmatpush1.bf16.msra.mxu0 0
    %1666 = vmatprep.subr.bf16.mxu0 0
    %1667 = vmatpush1.bf16.msra.mxu0 0
    %1668 = vmatprep.subr.bf16.mxu0 0
    %1669 = vmatpush1.bf16.msra.mxu0 0
    %1670 = vmatprep.subr.bf16.mxu0 0
    %1671 = vmatpush1.bf16.msra.mxu0 0
    %1672 = vmatprep.subr.bf16.mxu0 0
    %1673 = vmatpush1.bf16.msra.mxu0 0
    %1674 = vmatprep.subr.bf16.mxu0 0
    %1675 = vmatpush1.bf16.msra.mxu0 0
    %1676 = vmatprep.subr.bf16.mxu0 0
    %1677 = vmatpush1.bf16.msra.mxu0 0
    %1678 = vmatprep.mubr.bf16.mxu0 0
    %1679 = vmatmul.mubr.bf16.gmra.mrb[0].mxu0 %v1600
    %v1680 = vpop.f32.mrb[0].mxu0
    %v1681 = vadd.f32 0.0, %v1680
    %v1682 = vpop.f32.mrb[0].mxu0
    %v1683 = vpop.f32.mrb[0].mxu0
    %v1684 = vpop.f32.mrb[0].mxu0
    %1685 = vdwg.mxu0
    %v1687 = vrot.slane %v1681, 4
    %1688 = vrot.lane.b32.xlu0 %v1687, 32
    %v1689 = vpop.permute.xlu0 %1688
    %v1691 = vadd.f32 %v131, %v1689
    %1692 = vmatprep.subr.bf16.mxu0 0
    %1693 = vmatpush1.bf16.msra.mxu0 %v277
    %1694 = vmatprep.subr.bf16.mxu0 0
    %1695 = vmatpush1.bf16.msra.mxu0 %v278
    %1696 = vmatprep.subr.bf16.mxu0 0
    %1697 = vmatpush1.bf16.msra.mxu0 0
    %1698 = vmatprep.subr.bf16.mxu0 0
    %1699 = vmatpush1.bf16.msra.mxu0 0
    %1700 = vmatprep.subr.bf16.mxu0 0
    %1701 = vmatpush1.bf16.msra.mxu0 0
    %1702 = vmatprep.subr.bf16.mxu0 0
    %1703 = vmatpush1.bf16.msra.mxu0 0
    %1704 = vmatprep.subr.bf16.mxu0 0
    %1705 = vmatpush1.bf16.msra.mxu0 0
    %1706 = vmatprep.subr.bf16.mxu0 0
    %1707 = vmatpush1.bf16.msra.mxu0 0
    %1708 = vmatprep.subr.bf16.mxu0 0
    %1709 = vmatpush1.bf16.msra.mxu0 0
    %1710 = vmatprep.subr.bf16.mxu0 0
    %1711 = vmatpush1.bf16.msra.mxu0 0
    %1712 = vmatprep.subr.bf16.mxu0 0
    %1713 = vmatpush1.bf16.msra.mxu0 0
    %1714 = vmatprep.subr.bf16.mxu0 0
    %1715 = vmatpush1.bf16.msra.mxu0 0
    %1716 = vmatprep.subr.bf16.mxu0 0
    %1717 = vmatpush1.bf16.msra.mxu0 0
    %1718 = vmatprep.subr.bf16.mxu0 0
    %1719 = vmatpush1.bf16.msra.mxu0 0
    %1720 = vmatprep.subr.bf16.mxu0 0
    %1721 = vmatpush1.bf16.msra.mxu0 0
    %1722 = vmatprep.subr.bf16.mxu0 0
    %1723 = vmatpush1.bf16.msra.mxu0 0
    %1724 = vmatprep.mubr.bf16.mxu0 0
    %1725 = vmatmul.mubr.bf16.gmra.mrb[0].mxu0 %v1600
    %v1726 = vpop.f32.mrb[0].mxu0
    %v1727 = vadd.f32 0.0, %v1726
    %v1728 = vpop.f32.mrb[0].mxu0
    %v1729 = vpop.f32.mrb[0].mxu0
    %v1730 = vpop.f32.mrb[0].mxu0
    %1731 = vdwg.mxu0
    %v1733 = vrot.slane %v1727, 4
    %1734 = vrot.lane.b32.xlu0 %v1733, 64
    %v1735 = vpop.permute.xlu0 %1734
    %v1737 = vadd.f32 %v131, %v1735
    %1738 = vmatprep.subr.bf16.mxu0 0
    %1739 = vmatpush1.bf16.msra.mxu0 %v334
    %1740 = vmatprep.subr.bf16.mxu0 0
    %1741 = vmatpush1.bf16.msra.mxu0 %v335
    %1742 = vmatprep.subr.bf16.mxu0 0
    %1743 = vmatpush1.bf16.msra.mxu0 0
    %1744 = vmatprep.subr.bf16.mxu0 0
    %1745 = vmatpush1.bf16.msra.mxu0 0
    %1746 = vmatprep.subr.bf16.mxu0 0
    %1747 = vmatpush1.bf16.msra.mxu0 0
    %1748 = vmatprep.subr.bf16.mxu0 0
    %1749 = vmatpush1.bf16.msra.mxu0 0
    %1750 = vmatprep.subr.bf16.mxu0 0
    %1751 = vmatpush1.bf16.msra.mxu0 0
    %1752 = vmatprep.subr.bf16.mxu0 0
    %1753 = vmatpush1.bf16.msra.mxu0 0
    %1754 = vmatprep.subr.bf16.mxu0 0
    %1755 = vmatpush1.bf16.msra.mxu0 0
    %1756 = vmatprep.subr.bf16.mxu0 0
    %1757 = vmatpush1.bf16.msra.mxu0 0
    %1758 = vmatprep.subr.bf16.mxu0 0
    %1759 = vmatpush1.bf16.msra.mxu0 0
    %1760 = vmatprep.subr.bf16.mxu0 0
    %1761 = vmatpush1.bf16.msra.mxu0 0
    %1762 = vmatprep.subr.bf16.mxu0 0
    %1763 = vmatpush1.bf16.msra.mxu0 0
    %1764 = vmatprep.subr.bf16.mxu0 0
    %1765 = vmatpush1.bf16.msra.mxu0 0
    %1766 = vmatprep.subr.bf16.mxu0 0
    %1767 = vmatpush1.bf16.msra.mxu0 0
    %1768 = vmatprep.subr.bf16.mxu0 0
    %1769 = vmatpush1.bf16.msra.mxu0 0
    %1770 = vmatprep.mubr.bf16.mxu0 0
    %1771 = vmatmul.mubr.bf16.gmra.mrb[0].mxu0 %v1600
    %v1772 = vpop.f32.mrb[0].mxu0
    %v1773 = vadd.f32 0.0, %v1772
    %v1774 = vpop.f32.mrb[0].mxu0
    %v1775 = vpop.f32.mrb[0].mxu0
    %v1776 = vpop.f32.mrb[0].mxu0
    %1777 = vdwg.mxu0
    %v1779 = vrot.slane %v1773, 4
    %1780 = vrot.lane.b32.xlu0 %v1779, 96
    %v1781 = vpop.permute.xlu0 %1780
    %v1783 = vadd.f32 %v131, %v1781
    %v1784 = vxor.u32 %v1645, 2147483648
    %v1785 = vmul.f32 %v1784, 1.442695
    %v1786 = vpow.pop %v1785
    %v1787 = vadd.f32 %v1786, 1.0
    %v1788 = vrcp.pop %v1787
    %v1789 = vmul.f32 1.0, %v1788
    %v1790 = vxor.u32 %v1691, 2147483648
    %v1791 = vmul.f32 %v1790, 1.442695
    %v1792 = vpow.pop %v1791
    %v1793 = vadd.f32 %v1792, 1.0
    %v1794 = vrcp.pop %v1793
    %v1795 = vmul.f32 1.0, %v1794
    %v1796 = vtanh.pop %v1737
    %v1797 = vxor.u32 %v1783, 2147483648
    %v1798 = vmul.f32 %v1797, 1.442695
    %v1799 = vpow.pop %v1798
    %v1800 = vadd.f32 %v1799, 1.0
    %v1801 = vrcp.pop %v1800
    %v1802 = vmul.f32 1.0, %v1801
    %v1804 = vrot.slane %v1582, 6
    %v1806 = vmul.f32 %v1795, %v1804
    %1808 = vrot.lane.b32.xlu0 %v1796, 64
    %v1809 = vpop.permute.xlu0 %1808
    %v1811 = vmul.f32 %v1789, %v1809
    %1813 = vrot.lane.b32.xlu0 %v1811, 32
    %v1814 = vpop.permute.xlu0 %1813
    %v1816 = vadd.f32 %v1806, %v1814
    %v1817 = vtanh.pop %v1816
    %1819 = vrot.lane.b32.xlu0 %v1817, 64
    %v1820 = vpop.permute.xlu0 %1819
    %v1822 = vmul.f32 %v1802, %v1820
    %1824 = vrot.lane.b32.xlu0 %v1822, 32
    %v1825 = vpop.permute.xlu0 %1824
    %1827 = vst.msk [vmem:[#allocation2 + $0x8] sm:$0x30] %vm896, %v1825
    %v1828 = vpack.c.bf16 %v1822, %v1822
    %v1830 = vrot.slane %v1828, 2
    %1831 = vrot.lane.b32.xlu0 %v1830, 32
    %v1832 = vpop.permute.xlu0 %1831
    %v1834 = vsel %vm89, %v1832, 0
    %1836 = vmatprep.subr.bf16.mxu0 0
    %1837 = vmatpush1.bf16.msra.mxu0 %v164
    %1838 = vmatprep.subr.bf16.mxu0 0
    %1839 = vmatpush1.bf16.msra.mxu0 %v165
    %1840 = vmatprep.subr.bf16.mxu0 0
    %1841 = vmatpush1.bf16.msra.mxu0 0
    %1842 = vmatprep.subr.bf16.mxu0 0
    %1843 = vmatpush1.bf16.msra.mxu0 0
    %1844 = vmatprep.subr.bf16.mxu0 0
    %1845 = vmatpush1.bf16.msra.mxu0 0
    %1846 = vmatprep.subr.bf16.mxu0 0
    %1847 = vmatpush1.bf16.msra.mxu0 0
    %1848 = vmatprep.subr.bf16.mxu0 0
    %1849 = vmatpush1.bf16.msra.mxu0 0
    %1850 = vmatprep.subr.bf16.mxu0 0
    %1851 = vmatpush1.bf16.msra.mxu0 0
    %1852 = vmatprep.subr.bf16.mxu0 0
    %1853 = vmatpush1.bf16.msra.mxu0 0
    %1854 = vmatprep.subr.bf16.mxu0 0
    %1855 = vmatpush1.bf16.msra.mxu0 0
    %1856 = vmatprep.subr.bf16.mxu0 0
    %1857 = vmatpush1.bf16.msra.mxu0 0
    %1858 = vmatprep.subr.bf16.mxu0 0
    %1859 = vmatpush1.bf16.msra.mxu0 0
    %1860 = vmatprep.subr.bf16.mxu0 0
    %1861 = vmatpush1.bf16.msra.mxu0 0
    %1862 = vmatprep.subr.bf16.mxu0 0
    %1863 = vmatpush1.bf16.msra.mxu0 0
    %1864 = vmatprep.subr.bf16.mxu0 0
    %1865 = vmatpush1.bf16.msra.mxu0 0
    %1866 = vmatprep.subr.bf16.mxu0 0
    %1867 = vmatpush1.bf16.msra.mxu0 0
    %1868 = vmatprep.mubr.bf16.mxu0 0
    %1869 = vmatmul.mubr.bf16.gmra.mrb[0].mxu0 %v1834
    %v1870 = vpop.f32.mrb[0].mxu0
    %v1871 = vadd.f32 0.0, %v1870
    %v1872 = vpop.f32.mrb[0].mxu0
    %v1873 = vpop.f32.mrb[0].mxu0
    %v1874 = vpop.f32.mrb[0].mxu0
    %1875 = vdwg.mxu0
    %v1877 = vrot.slane %v1871, 2
    %v1879 = vadd.f32 %v131, %v1877
    %1880 = vmatprep.subr.bf16.mxu0 0
    %1881 = vmatpush1.bf16.msra.mxu0 %v220
    %1882 = vmatprep.subr.bf16.mxu0 0
    %1883 = vmatpush1.bf16.msra.mxu0 %v221
    %1884 = vmatprep.subr.bf16.mxu0 0
    %1885 = vmatpush1.bf16.msra.mxu0 0
    %1886 = vmatprep.subr.bf16.mxu0 0
    %1887 = vmatpush1.bf16.msra.mxu0 0
    %1888 = vmatprep.subr.bf16.mxu0 0
    %1889 = vmatpush1.bf16.msra.mxu0 0
    %1890 = vmatprep.subr.bf16.mxu0 0
    %1891 = vmatpush1.bf16.msra.mxu0 0
    %1892 = vmatprep.subr.bf16.mxu0 0
    %1893 = vmatpush1.bf16.msra.mxu0 0
    %1894 = vmatprep.subr.bf16.mxu0 0
    %1895 = vmatpush1.bf16.msra.mxu0 0
    %1896 = vmatprep.subr.bf16.mxu0 0
    %1897 = vmatpush1.bf16.msra.mxu0 0
    %1898 = vmatprep.subr.bf16.mxu0 0
    %1899 = vmatpush1.bf16.msra.mxu0 0
    %1900 = vmatprep.subr.bf16.mxu0 0
    %1901 = vmatpush1.bf16.msra.mxu0 0
    %1902 = vmatprep.subr.bf16.mxu0 0
    %1903 = vmatpush1.bf16.msra.mxu0 0
    %1904 = vmatprep.subr.bf16.mxu0 0
    %1905 = vmatpush1.bf16.msra.mxu0 0
    %1906 = vmatprep.subr.bf16.mxu0 0
    %1907 = vmatpush1.bf16.msra.mxu0 0
    %1908 = vmatprep.subr.bf16.mxu0 0
    %1909 = vmatpush1.bf16.msra.mxu0 0
    %1910 = vmatprep.subr.bf16.mxu0 0
    %1911 = vmatpush1.bf16.msra.mxu0 0
    %1912 = vmatprep.mubr.bf16.mxu0 0
    %1913 = vmatmul.mubr.bf16.gmra.mrb[0].mxu0 %v1834
    %v1914 = vpop.f32.mrb[0].mxu0
    %v1915 = vadd.f32 0.0, %v1914
    %v1916 = vpop.f32.mrb[0].mxu0
    %v1917 = vpop.f32.mrb[0].mxu0
    %v1918 = vpop.f32.mrb[0].mxu0
    %1919 = vdwg.mxu0
    %v1921 = vrot.slane %v1915, 2
    %1922 = vrot.lane.b32.xlu0 %v1921, 32
    %v1923 = vpop.permute.xlu0 %1922
    %v1925 = vadd.f32 %v131, %v1923
    %1926 = vmatprep.subr.bf16.mxu0 0
    %1927 = vmatpush1.bf16.msra.mxu0 %v277
    %1928 = vmatprep.subr.bf16.mxu0 0
    %1929 = vmatpush1.bf16.msra.mxu0 %v278
    %1930 = vmatprep.subr.bf16.mxu0 0
    %1931 = vmatpush1.bf16.msra.mxu0 0
    %1932 = vmatprep.subr.bf16.mxu0 0
    %1933 = vmatpush1.bf16.msra.mxu0 0
    %1934 = vmatprep.subr.bf16.mxu0 0
    %1935 = vmatpush1.bf16.msra.mxu0 0
    %1936 = vmatprep.subr.bf16.mxu0 0
    %1937 = vmatpush1.bf16.msra.mxu0 0
    %1938 = vmatprep.subr.bf16.mxu0 0
    %1939 = vmatpush1.bf16.msra.mxu0 0
    %1940 = vmatprep.subr.bf16.mxu0 0
    %1941 = vmatpush1.bf16.msra.mxu0 0
    %1942 = vmatprep.subr.bf16.mxu0 0
    %1943 = vmatpush1.bf16.msra.mxu0 0
    %1944 = vmatprep.subr.bf16.mxu0 0
    %1945 = vmatpush1.bf16.msra.mxu0 0
    %1946 = vmatprep.subr.bf16.mxu0 0
    %1947 = vmatpush1.bf16.msra.mxu0 0
    %1948 = vmatprep.subr.bf16.mxu0 0
    %1949 = vmatpush1.bf16.msra.mxu0 0
    %1950 = vmatprep.subr.bf16.mxu0 0
    %1951 = vmatpush1.bf16.msra.mxu0 0
    %1952 = vmatprep.subr.bf16.mxu0 0
    %1953 = vmatpush1.bf16.msra.mxu0 0
    %1954 = vmatprep.subr.bf16.mxu0 0
    %1955 = vmatpush1.bf16.msra.mxu0 0
    %1956 = vmatprep.subr.bf16.mxu0 0
    %1957 = vmatpush1.bf16.msra.mxu0 0
    %1958 = vmatprep.mubr.bf16.mxu0 0
    %1959 = vmatmul.mubr.bf16.gmra.mrb[0].mxu0 %v1834
    %v1960 = vpop.f32.mrb[0].mxu0
    %v1961 = vadd.f32 0.0, %v1960
    %v1962 = vpop.f32.mrb[0].mxu0
    %v1963 = vpop.f32.mrb[0].mxu0
    %v1964 = vpop.f32.mrb[0].mxu0
    %1965 = vdwg.mxu0
    %v1967 = vrot.slane %v1961, 2
    %1968 = vrot.lane.b32.xlu0 %v1967, 64
    %v1969 = vpop.permute.xlu0 %1968
    %v1971 = vadd.f32 %v131, %v1969
    %1972 = vmatprep.subr.bf16.mxu0 0
    %1973 = vmatpush1.bf16.msra.mxu0 %v334
    %1974 = vmatprep.subr.bf16.mxu0 0
    %1975 = vmatpush1.bf16.msra.mxu0 %v335
    %1976 = vmatprep.subr.bf16.mxu0 0
    %1977 = vmatpush1.bf16.msra.mxu0 0
    %1978 = vmatprep.subr.bf16.mxu0 0
    %1979 = vmatpush1.bf16.msra.mxu0 0
    %1980 = vmatprep.subr.bf16.mxu0 0
    %1981 = vmatpush1.bf16.msra.mxu0 0
    %1982 = vmatprep.subr.bf16.mxu0 0
    %1983 = vmatpush1.bf16.msra.mxu0 0
    %1984 = vmatprep.subr.bf16.mxu0 0
    %1985 = vmatpush1.bf16.msra.mxu0 0
    %1986 = vmatprep.subr.bf16.mxu0 0
    %1987 = vmatpush1.bf16.msra.mxu0 0
    %1988 = vmatprep.subr.bf16.mxu0 0
    %1989 = vmatpush1.bf16.msra.mxu0 0
    %1990 = vmatprep.subr.bf16.mxu0 0
    %1991 = vmatpush1.bf16.msra.mxu0 0
    %1992 = vmatprep.subr.bf16.mxu0 0
    %1993 = vmatpush1.bf16.msra.mxu0 0
    %1994 = vmatprep.subr.bf16.mxu0 0
    %1995 = vmatpush1.bf16.msra.mxu0 0
    %1996 = vmatprep.subr.bf16.mxu0 0
    %1997 = vmatpush1.bf16.msra.mxu0 0
    %1998 = vmatprep.subr.bf16.mxu0 0
    %1999 = vmatpush1.bf16.msra.mxu0 0
    %2000 = vmatprep.subr.bf16.mxu0 0
    %2001 = vmatpush1.bf16.msra.mxu0 0
    %2002 = vmatprep.subr.bf16.mxu0 0
    %2003 = vmatpush1.bf16.msra.mxu0 0
    %2004 = vmatprep.mubr.bf16.mxu0 0
    %2005 = vmatmul.mubr.bf16.gmra.mrb[0].mxu0 %v1834
    %v2006 = vpop.f32.mrb[0].mxu0
    %v2007 = vadd.f32 0.0, %v2006
    %v2008 = vpop.f32.mrb[0].mxu0
    %v2009 = vpop.f32.mrb[0].mxu0
    %v2010 = vpop.f32.mrb[0].mxu0
    %2011 = vdwg.mxu0
    %v2013 = vrot.slane %v2007, 2
    %2014 = vrot.lane.b32.xlu0 %v2013, 96
    %v2015 = vpop.permute.xlu0 %2014
    %v2017 = vadd.f32 %v131, %v2015
    %v2018 = vxor.u32 %v1879, 2147483648
    %v2019 = vmul.f32 %v2018, 1.442695
    %v2020 = vpow.pop %v2019
    %v2021 = vadd.f32 %v2020, 1.0
    %v2022 = vrcp.pop %v2021
    %v2023 = vmul.f32 1.0, %v2022
    %v2024 = vxor.u32 %v1925, 2147483648
    %v2025 = vmul.f32 %v2024, 1.442695
    %v2026 = vpow.pop %v2025
    %v2027 = vadd.f32 %v2026, 1.0
    %v2028 = vrcp.pop %v2027
    %v2029 = vmul.f32 1.0, %v2028
    %v2030 = vtanh.pop %v1971
    %v2031 = vxor.u32 %v2017, 2147483648
    %v2032 = vmul.f32 %v2031, 1.442695
    %v2033 = vpow.pop %v2032
    %v2034 = vadd.f32 %v2033, 1.0
    %v2035 = vrcp.pop %v2034
    %v2036 = vmul.f32 1.0, %v2035
    %v2038 = vrot.slane %v1816, 6
    %v2040 = vmul.f32 %v2029, %v2038
    %2042 = vrot.lane.b32.xlu0 %v2030, 64
    %v2043 = vpop.permute.xlu0 %2042
    %v2045 = vmul.f32 %v2023, %v2043
    %2047 = vrot.lane.b32.xlu0 %v2045, 32
    %v2048 = vpop.permute.xlu0 %2047
    %v2050 = vadd.f32 %v2040, %v2048
    %v2051 = vtanh.pop %v2050
    %2053 = vrot.lane.b32.xlu0 %v2051, 64
    %v2054 = vpop.permute.xlu0 %2053
    %v2056 = vmul.f32 %v2036, %v2054
    %2058 = vrot.lane.b32.xlu0 %v2056, 32
    %v2059 = vpop.permute.xlu0 %2058
    %2061 = vst.msk [vmem:[#allocation2 + $0x8] sm:$0xc0] %vm1131, %v2059
    %2062 = vst.msk [vmem:[#allocation9 - $0x6] sm:$0xc0] %vm1131, %v2059
    %2064 = vrot.lane.b32.xlu0 %v2050, 96
    %v2065 = vpop.permute.xlu0 %2064
    %2067 = vst.msk [vmem:[#allocation11 - $0x6] sm:$0xc0] %vm1131, %v2065
    %v2068 = vld [vmem:[#allocation2] sm:$0xff]
    %v2069 = vld [vmem:[#allocation2 + $0x8] sm:$0xff]
    %v2070 = vpack.c.bf16 %v2069, %v2068
    %v2071 = vld [vmem:[%s4] sm:$0xf]
    %v2072 = vld [vmem:[%s4 + $0x4] sm:$0xf]
    %v2073 = vld [vmem:[%s4 + $0x8] sm:$0xf]
    %v2074 = vld [vmem:[%s4 + $0xc] sm:$0xf]
    %v2075 = vld [vmem:[%s5] sm:$0x1]
    %v2077 = vlaneseq
    %v2078 = vshrl.u32 %v2077, 7
    %v2079 = vsub.s32 0, %v2078
    %v2080 = vrot.slane %v2075, %v2079
    %v2086 = vunpack.c.l.b16 %v2071
    %v2087 = vunpack.c.l.b16 %v2072
    %v2088 = vunpack.c.l.b16 %v2073
    %v2089 = vunpack.c.l.b16 %v2074
    %v2090 = vpack.c.b16 %v2087, %v2086
    %v2091 = vpack.c.b16 %v2089, %v2088
    %v2095 = vsel %vm89, %v2070, 0
    %2097 = vmatprep.subr.bf16.mxu0 0
    %2098 = vmatpush1.bf16.msra.mxu0 %v2090
    %2099 = vmatprep.subr.bf16.mxu0 0
    %2100 = vmatpush1.bf16.msra.mxu0 %v2091
    %2101 = vmatprep.subr.bf16.mxu0 0
    %2102 = vmatpush1.bf16.msra.mxu0 0
    %2103 = vmatprep.subr.bf16.mxu0 0
    %2104 = vmatpush1.bf16.msra.mxu0 0
    %2105 = vmatprep.subr.bf16.mxu0 0
    %2106 = vmatpush1.bf16.msra.mxu0 0
    %2107 = vmatprep.subr.bf16.mxu0 0
    %2108 = vmatpush1.bf16.msra.mxu0 0
    %2109 = vmatprep.subr.bf16.mxu0 0
    %2110 = vmatpush1.bf16.msra.mxu0 0
    %2111 = vmatprep.subr.bf16.mxu0 0
    %2112 = vmatpush1.bf16.msra.mxu0 0
    %2113 = vmatprep.subr.bf16.mxu0 0
    %2114 = vmatpush1.bf16.msra.mxu0 0
    %2115 = vmatprep.subr.bf16.mxu0 0
    %2116 = vmatpush1.bf16.msra.mxu0 0
    %2117 = vmatprep.subr.bf16.mxu0 0
    %2118 = vmatpush1.bf16.msra.mxu0 0
    %2119 = vmatprep.subr.bf16.mxu0 0
    %2120 = vmatpush1.bf16.msra.mxu0 0
    %2121 = vmatprep.subr.bf16.mxu0 0
    %2122 = vmatpush1.bf16.msra.mxu0 0
    %2123 = vmatprep.subr.bf16.mxu0 0
    %2124 = vmatpush1.bf16.msra.mxu0 0
    %2125 = vmatprep.subr.bf16.mxu0 0
    %2126 = vmatpush1.bf16.msra.mxu0 0
    %2127 = vmatprep.subr.bf16.mxu0 0
    %2128 = vmatpush1.bf16.msra.mxu0 0
    %2129 = vmatprep.mubr.bf16.mxu0 0
    %2130 = vmatmul.mubr.bf16.gmra.mrb[0].mxu0 %v2095
    %v2131 = vpop.f32.mrb[0].mxu0
    %v2132 = vadd.f32 %v2080, %v2131
    %v2133 = vpop.f32.mrb[0].mxu0
    %v2134 = vpop.f32.mrb[0].mxu0
    %v2135 = vadd.f32 %v2080, %v2134
    %v2136 = vpop.f32.mrb[0].mxu0
    %2137 = vdwg.mxu0
    %vm2138 = vcmask 130048
    %2139 = vst.msk [vmem:[#allocation8] sm:$0xff] %vm2138, %v2132
    %2140 = vst.msk [vmem:[#allocation8 + $0x8] sm:$0xff] %vm2138, %v2135
    // Predicated region
    $region42: #{tpu_custom_call.1} parent=1 // pred_check
      _
    $region43: #{tpu_custom_call.1} parent=1 // pred_check_branch
      %2142 = sbr.rel (0) target = $region45
    $region44: #{tpu_custom_call.1} parent=1 // pred_region
      %s2144 = ssub.s32 256, 256
      %2145 = vsyncadd [#allocation5], %s2144
      %s2146 = sshll.u32 [#allocation8], 4
      %s2147 = int_to_ptr.vmem [resolvable:$true] %s2146
      %2152 = dma.vmem_to_hbm [thread:$0]  %s2147, 256, %s8, [#allocation5], 128, 128, 8
    $region45: #{tpu_custom_call.1} parent=1 // pred_fallthru
      _
    // Predicated region
    $region46: #{tpu_custom_call.1} parent=1 // pred_check
      _
    $region47: #{tpu_custom_call.1} parent=1 // pred_check_branch
      %2154 = sbr.rel (0) target = $region49
    $region48: #{tpu_custom_call.1} parent=1 // pred_region
      %s2156 = ssub.s32 32, 32
      %2157 = vsyncadd [#allocation10], %s2156
      %s2159 = sshll.u32 [#allocation9], 4
      %s2160 = int_to_ptr.vmem [resolvable:$true] %s2159
      %2162 = dma.vmem_to_hbm [thread:$0]  %s2160, 32, %s9, [#allocation10]
    $region49: #{tpu_custom_call.1} parent=1 // pred_fallthru
      _
    // Predicated region
    $region50: #{tpu_custom_call.1} parent=1 // pred_check
      _
    $region51: #{tpu_custom_call.1} parent=1 // pred_check_branch
      %2164 = sbr.rel (0) target = $region53
    $region52: #{tpu_custom_call.1} parent=1 // pred_region
      %s2166 = ssub.s32 32, 32
      %2167 = vsyncadd [#allocation10], %s2166
      %s2169 = sshll.u32 [#allocation11], 4
      %s2170 = int_to_ptr.vmem [resolvable:$true] %s2169
      %2172 = dma.vmem_to_hbm [thread:$0]  %s2170, 32, %s10, [#allocation10]
    $region53: #{tpu_custom_call.1} parent=1 // pred_fallthru
      _
    // Predicated region
    $region54: #{tpu_custom_call.1} parent=1 // pred_check
      _
    $region55: #{tpu_custom_call.1} parent=1 // pred_check_branch
      %2174 = sbr.rel (0) target = $region57
    $region56: #{tpu_custom_call.1} parent=1 // pred_region
      %2175 = dma.done [#allocation5], 256
    $region57: #{tpu_custom_call.1} parent=1 // pred_fallthru
      _
    // Predicated region
    $region58: #{tpu_custom_call.1} parent=1 // pred_check
      _
    $region59: #{tpu_custom_call.1} parent=1 // pred_check_branch
      %2177 = sbr.rel (0) target = $region61
    $region60: #{tpu_custom_call.1} parent=1 // pred_region
      %2178 = dma.done [#allocation10], 32
    $region61: #{tpu_custom_call.1} parent=1 // pred_fallthru
      _
    // Predicated region
    $region62: #{tpu_custom_call.1} parent=1 // pred_check
      _
    $region63: #{tpu_custom_call.1} parent=1 // pred_check_branch
      %2180 = sbr.rel (0) target = $region65
    $region64: #{tpu_custom_call.1} parent=1 // pred_region
      %2181 = dma.done [#allocation10], 32
    $region65: #{tpu_custom_call.1} parent=1 // pred_fallthru
      _
    %2182 = vsyncpa [#allocation4], 1
    %2183 = vsyncpa [#allocation7], 1
    %2184 = vsyncpa [#allocation5], 1
    %2185 = vsyncpa [#allocation10], 1

</llo_original>
